<compile_context>
chip_gen: v5e
topology: v5e:2x2
jax: 0.10.0
libtpu: 0.0.40
codegen_flags: <defaults>
</compile_context>

<pallas_src>
import functools
import math

import jax
import jax.numpy as jnp
from jax import lax
from jax.experimental import pallas as pl
from jax.experimental.pallas import tpu as pltpu

_BIG = 3.0e38            # > any real squared distance, finite (no inf arithmetic)
_SENTINEL_COORD = 1e15   # N-padding points: squared distance ~3e30 << _BIG


def _round_up(x, m):
    return (x + m - 1) // m * m


def _vmem_capacity_bytes():
    try:
        return int(pltpu.get_tpu_info().vmem_capacity_bytes)
    except Exception:
        return 64 << 20   # v7x per-TensorCore VMEM; conservative for v5e/v6e


def _pick_tiles(Mp, N, budget_bytes):
    """Choose (mt, nt, nc). ~4 live (mt, nt) f32 temporaries dominate VMEM."""
    per_elem = 16  # bytes per (mt, nt) element across the live temporaries
    nt_floor = min(_round_up(N, 128), 512)
    mt = 128
    for cand in (1024, 512, 256, 128):
        if Mp % cand == 0 and per_elem * cand * nt_floor <= budget_bytes:
            mt = cand
            break
    max_nt = max(128, (budget_bytes // (per_elem * mt)) // 128 * 128)
    if _round_up(N, 128) <= max_nt:
        return mt, N, 1                     # single chunk (full-dim block, no padding)
    nt = min(max_nt, 2048)
    return mt, nt, pl.cdiv(N, nt)


def _estimate_vmem_bytes(mt, nt):
    est = 16 * mt * nt                       # ~4 live (mt, nt) f32 temporaries
    est += 2 * 8 * nt * 4                    # double-buffered points block (sublane padded)
    est += 2 * mt * 128 * 4                  # double-buffered query block (lane padded 3->128)
    est += 2 * 8 * mt * 4                    # double-buffered output block
    est += (mt * 128 + 8 * mt + 8 * mt) * 4  # scratch: topk + acc + wsum
    return est


def _soft_projection_kernel(points_ref, queries_ref, out_ref,
                            topk_ref, acc_ref, wsum_ref,
                            *, group_size, num_chunks):
    # points_ref : (1, 3, nt)   channel-first point-cloud chunk
    # queries_ref: (1, mt, 3)   points-last query tile (tiny)
    # out_ref    : (1, 3, mt)   channel-first projected points (lane-dense store)
    # topk_ref   : (mt, 128)    running K smallest (distinct) distances
    # acc_ref    : (3, mt)      running weighted coordinate sums
    # wsum_ref   : (1, mt)      running weight sums
    s = pl.program_id(2)
    nc = num_chunks
    big = jnp.float32(_BIG)

    @pl.when(s == 0)
    def _init():
        topk_ref[...] = jnp.full_like(topk_ref, big)
        acc_ref[...] = jnp.zeros_like(acc_ref)
        wsum_ref[...] = jnp.zeros_like(wsum_ref)

    p = points_ref[0]                                             # (3, nt)
    q2 = queries_ref[0] * 2.0                                     # (mt, 3), fold x2 here
    # Squared distance up to a per-query constant shift:
    #   d[m, n] = ||p_n||^2 - 2 q_m . p_n  ( == ||q_m - p_n||^2 - ||q_m||^2 )
    p_sq = jnp.sum(p * p, axis=0, keepdims=True)                  # (1, nt)
    qp2 = jnp.dot(q2, p, preferred_element_type=jnp.float32)      # (mt, nt)  MXU
    d = p_sq - qp2                                                # (mt, nt)

    # ---- phase 1 (s < nc): merge this chunk into the running K smallest ----
    @pl.when(s < nc)
    def _select():
        lane = lax.broadcasted_iota(jnp.int32, topk_ref.shape, 1)   # (mt, 128)
        carried = topk_ref[...]
        new_topk = jnp.full(topk_ref.shape, big, jnp.float32)
        d_work = d
        for k in range(group_size):
            cur = jnp.minimum(jnp.min(carried, axis=-1, keepdims=True),
                              jnp.min(d_work, axis=-1, keepdims=True))   # (mt, 1)
            new_topk = jnp.where(lane == k, cur, new_topk)
            if k + 1 < group_size:                       # last re-mask is dead work
                carried = jnp.where(carried == cur, big, carried)
                d_work = jnp.where(d_work == cur, big, d_work)
        topk_ref[...] = new_topk

    # ---- phase 2 (s >= nc): accumulate softmax(-d) weighted sums (MXU) ----
    @pl.when(s >= nc)
    def _accumulate():
        topk = topk_ref[...]
        lane = lax.broadcasted_iota(jnp.int32, topk.shape, 1)
        thr = jnp.max(jnp.where(lane < group_size, topk, -big),
                      axis=-1, keepdims=True)                       # (mt, 1) K-th smallest
        dmin = jnp.min(topk, axis=-1, keepdims=True)                # (mt, 1) global min
        # exp of the ORIGINAL d shifted by the global min: <= 1 on selected,
        # underflows to 0 far away (sentinel padding included) -> stable.
        w = jnp.where(d <= thr, jnp.exp(dmin - d), 0.0)             # (mt, nt)
        ones_row = jnp.ones((1, w.shape[1]), jnp.float32)
        acc_ref[...] += lax.dot_general(
            p, w, (((1,), (1,)), ((), ())),
            preferred_element_type=jnp.float32)                     # (3, mt)
        wsum_ref[...] += lax.dot_general(
            ones_row, w, (((1,), (1,)), ((), ())),
            preferred_element_type=jnp.float32)                     # (1, mt)

    @pl.when(s == 2 * nc - 1)
    def _finalize():
        # Exact normalization on the tiny (3, mt) result (post-MXU).
        out_ref[0] = (acc_ref[...] / wsum_ref[...]).astype(out_ref.dtype)


def soft_projection_project(point_cloud, query_cloud, group_size,
                            block_m=None, block_n=None):
    """SoftProjection.forward(..., action='project').

    point_cloud: (B, 3, N) f32, query_cloud: (B, 3, M) f32 -> (B, 3, M) f32.
    """
    B, C, N = point_cloud.shape
    Bq, Cq, M = query_cloud.shape
    assert C == 3 and Cq == 3 and Bq == B
    assert 1 <= group_size <= 128
    assert N >= group_size, "need at least group_size database points (like top_k)"

    p = point_cloud.astype(jnp.float32)                               # (B, 3, N)
    q = jnp.transpose(query_cloud, (0, 2, 1)).astype(jnp.float32)     # (B, M, 3)

    cap = _vmem_capacity_bytes()
    temp_budget = (cap * 3) // 8          # ~24 MiB on v7x, ~48 MiB on v5e/v6e

    # ---- tiling (lane-dense M tiles, bounded-N chunks) ----
    Mp = _round_up(M, 128)
    mt_auto, nt_auto, nc_auto = _pick_tiles(Mp, N, temp_budget)
    if block_m is not None:
        assert block_m % 128 == 0
        Mp = _round_up(M, block_m)
        mt = block_m
    else:
        mt = mt_auto
        # v7x megacore: make sure the parallel axes have >= 2 steps.
        if B * (Mp // mt) < 2:
            for cand in (512, 256, 128):
                if cand < Mp and Mp % cand == 0:
                    mt = cand
                    break
    if block_n is not None:
        assert block_n == N or block_n % 128 == 0
        nt = block_n
        nc = pl.cdiv(N, nt)
    else:
        nt, nc = nt_auto, nc_auto

    # ---- padding ----
    if Mp != M:
        q = jnp.pad(q, ((0, 0), (0, Mp - M), (0, 0)))                 # zero queries, sliced off
    Np = nt * nc
    if Np != N:
        # far-away sentinel points: never enter the top-K, weight underflows to 0
        p = jnp.pad(p, ((0, 0), (0, 0), (0, Np - N)),
                    constant_values=_SENTINEL_COORD)

    grid = (B, Mp // mt, 2 * nc)
    vmem_limit = int(min(cap - (8 << 20),
                         max(32 << 20, _estimate_vmem_bytes(mt, nt) + (16 << 20))))

    kernel = functools.partial(_soft_projection_kernel,
                               group_size=group_size, num_chunks=nc)
    out = pl.pallas_call(
        kernel,
        out_shape=jax.ShapeDtypeStruct((B, 3, Mp), jnp.float32),
        grid_spec=pltpu.PrefetchScalarGridSpec(
            num_scalar_prefetch=0,
            grid=grid,
            in_specs=[
                pl.BlockSpec((1, 3, nt), lambda b, m, s: (b, 0, s % nc)),  # points chunk
                pl.BlockSpec((1, mt, 3), lambda b, m, s: (b, m, 0)),       # query tile
            ],
            out_specs=pl.BlockSpec((1, 3, mt), lambda b, m, s: (b, 0, m)),
            scratch_shapes=[
                pltpu.VMEM((mt, 128), jnp.float32),   # running top-K distances
                pltpu.VMEM((3, mt), jnp.float32),     # weighted coordinate accumulator
                pltpu.VMEM((1, mt), jnp.float32),     # weight-sum accumulator
            ],
        ),
        compiler_params=pltpu.CompilerParams(
            dimension_semantics=("parallel", "parallel", "arbitrary"),
            vmem_limit_bytes=vmem_limit),
    )(p, q)

    if Mp != M:
        out = out[:, :, :M]
    return out


if __name__ == "__main__":
    group_size = 8
    # SoftProjection.__init__ parameters (the 'project' path uses plain squared
    # distances, so temperature / sigma annealing does not affect the output;
    # materialized here only for parity with the reference module).
    initial_temperature = 1.0
    min_sigma = 1e-4
    all_epoch = 200
    temperature = jnp.float32(initial_temperature)                   # nn.Parameter
    anneal_rate = math.exp(math.log(min_sigma / initial_temperature ** 2) / all_epoch)
    _ = (temperature, anneal_rate)

    def reference(point_cloud, query_cloud, k):
        # Pure-JAX reference: knn via top_k + gather + softmax weighted sum.
        def one(p_b, q_b):                                           # (N,3), (M,3)
            dist = jnp.sum((q_b[:, None, :] - p_b[None, :, :]) ** 2, axis=-1)
            neg_d_k, idx = lax.top_k(-dist, k)
            w = jax.nn.softmax(neg_d_k, axis=-1)
            return jnp.sum(w[..., None] * p_b[idx], axis=1)          # (M, 3)
        p_ref = jnp.transpose(point_cloud, (0, 2, 1))
        q_ref = jnp.transpose(query_cloud, (0, 2, 1))
        return jnp.transpose(jax.vmap(one)(p_ref, q_ref), (0, 2, 1))  # (B, 3, M)

    key = jax.random.PRNGKey(0)
    kp, kq, kp2 = jax.random.split(key, 3)

    # Primary small example (single point-cloud chunk, padded-M path).
    B, N, M = 2, 128, 16
    point_cloud = jax.random.normal(kp, (B, 3, N), dtype=jnp.float32)
    query_cloud = jax.random.normal(kq, (B, 3, M), dtype=jnp.float32)
    projected = soft_projection_project(point_cloud, query_cloud, group_size)
    projected = jax.block_until_ready(projected)
    assert projected.shape == (B, 3, M)
    ref = reference(point_cloud, query_cloud, group_size)
    assert jnp.allclose(projected, ref, atol=2e-3, rtol=2e-3), (
        "Pallas SoftProjection mismatch vs JAX reference (single chunk)")

    # Also exercise the streamed (N-chunked, sentinel-padded) path.
    N2 = 300
    point_cloud2 = jax.random.normal(kp2, (B, 3, N2), dtype=jnp.float32)
    projected2 = soft_projection_project(point_cloud2, query_cloud, group_size,
                                         block_n=128)
    projected2 = jax.block_until_ready(projected2)
    ref2 = reference(point_cloud2, query_cloud, group_size)
    assert jnp.allclose(projected2, ref2, atol=2e-3, rtol=2e-3), (
        "Pallas SoftProjection mismatch vs JAX reference (chunked N)")

    print("KERNEL_OK")
</pallas_src>

<mosaic_0001>
module attributes {stable_mosaic.version = 11 : i64} {
  func.func @_soft_projection_kernel(%arg0: i32, %arg1: i32, %arg2: i32, %arg3: memref<1x3x128xf32, #tpu.memory_space<vmem>>, %arg4: memref<1x128x3xf32, #tpu.memory_space<vmem>>, %arg5: memref<1x3x128xf32, #tpu.memory_space<vmem>>, %arg6: memref<128x128xf32, #tpu.memory_space<vmem>>, %arg7: memref<3x128xf32, #tpu.memory_space<vmem>>, %arg8: memref<1x128xf32, #tpu.memory_space<vmem>>) attributes {dimension_semantics = [#tpu.dimension_semantics<parallel>, #tpu.dimension_semantics<parallel>, #tpu.dimension_semantics<arbitrary>], iteration_bounds = array<i64: 2, 1, 2>, scalar_prefetch = 0 : i64, scratch_operands = 3 : i64, tpu.core_type = #tpu.core_type<tc>, window_params = [{transform_indices = @transform_0, window_bounds = array<i64: 1, 3, 128>}, {transform_indices = @transform_1, window_bounds = array<i64: 1, 128, 3>}, {transform_indices = @transform_2, window_bounds = array<i64: 1, 3, 128>}]} {
    %c0_i32 = arith.constant 0 : i32
    %0 = arith.cmpi eq, %arg2, %c0_i32 : i32
    %1 = arith.extui %0 : i1 to i32
    %cst = arith.constant 3.000000e+38 : f32
    %c0_i32_0 = arith.constant 0 : i32
    %2 = arith.cmpi ne, %1, %c0_i32_0 : i32
    scf.if %2 {
      %24 = vector.broadcast %cst : f32 to vector<128x128xf32>
      %c0_16 = arith.constant 0 : index
      %c0_17 = arith.constant 0 : index
      %25 = vector.load %arg6[%c0_16, %c0_17] : memref<128x128xf32, #tpu.memory_space<vmem>>, vector<128x128xf32>
      tpu.vector_store %arg6[%c0_16, %c0_17], %24 {strides = array<i32>} : memref<128x128xf32, #tpu.memory_space<vmem>>, vector<128x128xf32>,
      %cst_18 = arith.constant 0.000000e+00 : f32
      %26 = vector.broadcast %cst_18 : f32 to vector<3x128xf32>
      %c0_19 = arith.constant 0 : index
      %c0_20 = arith.constant 0 : index
      %27 = vector.load %arg7[%c0_19, %c0_20] : memref<3x128xf32, #tpu.memory_space<vmem>>, vector<3x128xf32>
      tpu.vector_store %arg7[%c0_19, %c0_20], %26 {strides = array<i32>} : memref<3x128xf32, #tpu.memory_space<vmem>>, vector<3x128xf32>,
      %cst_21 = arith.constant 0.000000e+00 : f32
      %28 = vector.broadcast %cst_21 : f32 to vector<1x128xf32>
      %c0_22 = arith.constant 0 : index
      %c0_23 = arith.constant 0 : index
      %29 = vector.load %arg8[%c0_22, %c0_23] : memref<1x128xf32, #tpu.memory_space<vmem>>, vector<1x128xf32>
      tpu.vector_store %arg8[%c0_22, %c0_23], %28 {strides = array<i32>} : memref<1x128xf32, #tpu.memory_space<vmem>>, vector<1x128xf32>,
    } else {
    }
    %c0 = arith.constant 0 : index
    %c0_1 = arith.constant 0 : index
    %c0_2 = arith.constant 0 : index
    %3 = vector.load %arg3[%c0, %c0_1, %c0_2] : memref<1x3x128xf32, #tpu.memory_space<vmem>>, vector<1x3x128xf32>
    %4 = vector.shape_cast %3 : vector<1x3x128xf32> to vector<3x128xf32>
    %c0_3 = arith.constant 0 : index
    %c0_4 = arith.constant 0 : index
    %c0_5 = arith.constant 0 : index
    %5 = vector.load %arg4[%c0_3, %c0_4, %c0_5] : memref<1x128x3xf32, #tpu.memory_space<vmem>>, vector<1x128x3xf32>
    %6 = vector.shape_cast %5 : vector<1x128x3xf32> to vector<128x3xf32>
    %cst_6 = arith.constant 2.000000e+00 : f32
    %7 = vector.broadcast %cst_6 : f32 to vector<128x3xf32>
    %8 = arith.mulf %6, %7 : vector<128x3xf32>
    %9 = arith.mulf %4, %4 : vector<3x128xf32>
    %cst_7 = arith.constant dense<0.000000e+00> : vector<128xf32>
    %10 = vector.multi_reduction <add>, %9, %cst_7 [0] : vector<3x128xf32> to vector<128xf32>
    %11 = vector.shape_cast %10 : vector<128xf32> to vector<1x128xf32>
    %cst_8 = arith.constant dense<0.000000e+00> : vector<128x128xf32>
    %12 = tpu.matmul %8, %4, %cst_8 {dimension_numbers = #tpu.dot_dimension_numbers<[1], [0], [0], [1], [0, 0, 1, 1], [], []>} : vector<128x3xf32>, vector<3x128xf32>, vector<128x128xf32> -> vector<128x128xf32>
    %13 = vector.broadcast %11 : vector<1x128xf32> to vector<128x128xf32>
    %14 = arith.subf %13, %12 : vector<128x128xf32>
    %c1_i32 = arith.constant 1 : i32
    %15 = arith.cmpi slt, %arg2, %c1_i32 : i32
    %16 = arith.extui %15 : i1 to i32
    %cst_9 = arith.constant 3.000000e+38 : f32
    %c0_i32_10 = arith.constant 0 : i32
    %17 = arith.cmpi ne, %16, %c0_i32_10 : i32
    scf.if %17 {
      %24 = tpu.iota {dimensions = array<i32: 1>} : vector<128x128xi32>
      %c0_16 = arith.constant 0 : index
      %c0_17 = arith.constant 0 : index
      %25 = vector.load %arg6[%c0_16, %c0_17] : memref<128x128xf32, #tpu.memory_space<vmem>>, vector<128x128xf32>
      %26 = vector.broadcast %cst_9 : f32 to vector<128x128xf32>
      %cst_18 = arith.constant dense<0x7F800000> : vector<128xf32>
      %27 = vector.multi_reduction <minimumf>, %25, %cst_18 [1] : vector<128x128xf32> to vector<128xf32>
      %28 = vector.shape_cast %27 : vector<128xf32> to vector<128x1xf32>
      %cst_19 = arith.constant dense<0x7F800000> : vector<128xf32>
      %29 = vector.multi_reduction <minimumf>, %14, %cst_19 [1] : vector<128x128xf32> to vector<128xf32>
      %30 = vector.shape_cast %29 : vector<128xf32> to vector<128x1xf32>
      %31 = arith.minimumf %28, %30 : vector<128x1xf32>
      %c0_i32_20 = arith.constant 0 : i32
      %32 = vector.broadcast %c0_i32_20 : i32 to vector<128x128xi32>
      %33 = arith.cmpi eq, %24, %32 : vector<128x128xi32>
      %34 = vector.shape_cast %31 : vector<128x1xf32> to vector<128x1xf32>
      %35 = vector.broadcast %34 : vector<128x1xf32> to vector<128x128xf32>
      %36 = arith.select %33, %35, %26 : vector<128x128xi1>, vector<128x128xf32>
      %37 = vector.broadcast %31 : vector<128x1xf32> to vector<128x128xf32>
      %38 = arith.cmpf oeq, %25, %37 : vector<128x128xf32>
      %39 = vector.broadcast %cst_9 : f32 to vector<128x128xf32>
      %40 = arith.select %38, %39, %25 : vector<128x128xi1>, vector<128x128xf32>
      %41 = vector.broadcast %31 : vector<128x1xf32> to vector<128x128xf32>
      %42 = arith.cmpf oeq, %14, %41 : vector<128x128xf32>
      %43 = vector.broadcast %cst_9 : f32 to vector<128x128xf32>
      %44 = arith.select %42, %43, %14 : vector<128x128xi1>, vector<128x128xf32>
      %cst_21 = arith.constant dense<0x7F800000> : vector<128xf32>
      %45 = vector.multi_reduction <minimumf>, %40, %cst_21 [1] : vector<128x128xf32> to vector<128xf32>
      %46 = vector.shape_cast %45 : vector<128xf32> to vector<128x1xf32>
      %cst_22 = arith.constant dense<0x7F800000> : vector<128xf32>
      %47 = vector.multi_reduction <minimumf>, %44, %cst_22 [1] : vector<128x128xf32> to vector<128xf32>
      %48 = vector.shape_cast %47 : vector<128xf32> to vector<128x1xf32>
      %49 = arith.minimumf %46, %48 : vector<128x1xf32>
      %c1_i32_23 = arith.constant 1 : i32
      %50 = vector.broadcast %c1_i32_23 : i32 to vector<128x128xi32>
      %51 = arith.cmpi eq, %24, %50 : vector<128x128xi32>
      %52 = vector.shape_cast %49 : vector<128x1xf32> to vector<128x1xf32>
      %53 = vector.broadcast %52 : vector<128x1xf32> to vector<128x128xf32>
      %54 = arith.select %51, %53, %36 : vector<128x128xi1>, vector<128x128xf32>
      %55 = vector.broadcast %49 : vector<128x1xf32> to vector<128x128xf32>
      %56 = arith.cmpf oeq, %40, %55 : vector<128x128xf32>
      %57 = vector.broadcast %cst_9 : f32 to vector<128x128xf32>
      %58 = arith.select %56, %57, %40 : vector<128x128xi1>, vector<128x128xf32>
      %59 = vector.broadcast %49 : vector<128x1xf32> to vector<128x128xf32>
      %60 = arith.cmpf oeq, %44, %59 : vector<128x128xf32>
      %61 = vector.broadcast %cst_9 : f32 to vector<128x128xf32>
      %62 = arith.select %60, %61, %44 : vector<128x128xi1>, vector<128x128xf32>
      %cst_24 = arith.constant dense<0x7F800000> : vector<128xf32>
      %63 = vector.multi_reduction <minimumf>, %58, %cst_24 [1] : vector<128x128xf32> to vector<128xf32>
      %64 = vector.shape_cast %63 : vector<128xf32> to vector<128x1xf32>
      %cst_25 = arith.constant dense<0x7F800000> : vector<128xf32>
      %65 = vector.multi_reduction <minimumf>, %62, %cst_25 [1] : vector<128x128xf32> to vector<128xf32>
      %66 = vector.shape_cast %65 : vector<128xf32> to vector<128x1xf32>
      %67 = arith.minimumf %64, %66 : vector<128x1xf32>
      %c2_i32 = arith.constant 2 : i32
      %68 = vector.broadcast %c2_i32 : i32 to vector<128x128xi32>
      %69 = arith.cmpi eq, %24, %68 : vector<128x128xi32>
      %70 = vector.shape_cast %67 : vector<128x1xf32> to vector<128x1xf32>
      %71 = vector.broadcast %70 : vector<128x1xf32> to vector<128x128xf32>
      %72 = arith.select %69, %71, %54 : vector<128x128xi1>, vector<128x128xf32>
      %73 = vector.broadcast %67 : vector<128x1xf32> to vector<128x128xf32>
      %74 = arith.cmpf oeq, %58, %73 : vector<128x128xf32>
      %75 = vector.broadcast %cst_9 : f32 to vector<128x128xf32>
      %76 = arith.select %74, %75, %58 : vector<128x128xi1>, vector<128x128xf32>
      %77 = vector.broadcast %67 : vector<128x1xf32> to vector<128x128xf32>
      %78 = arith.cmpf oeq, %62, %77 : vector<128x128xf32>
      %79 = vector.broadcast %cst_9 : f32 to vector<128x128xf32>
      %80 = arith.select %78, %79, %62 : vector<128x128xi1>, vector<128x128xf32>
      %cst_26 = arith.constant dense<0x7F800000> : vector<128xf32>
      %81 = vector.multi_reduction <minimumf>, %76, %cst_26 [1] : vector<128x128xf32> to vector<128xf32>
      %82 = vector.shape_cast %81 : vector<128xf32> to vector<128x1xf32>
      %cst_27 = arith.constant dense<0x7F800000> : vector<128xf32>
      %83 = vector.multi_reduction <minimumf>, %80, %cst_27 [1] : vector<128x128xf32> to vector<128xf32>
      %84 = vector.shape_cast %83 : vector<128xf32> to vector<128x1xf32>
      %85 = arith.minimumf %82, %84 : vector<128x1xf32>
      %c3_i32 = arith.constant 3 : i32
      %86 = vector.broadcast %c3_i32 : i32 to vector<128x128xi32>
      %87 = arith.cmpi eq, %24, %86 : vector<128x128xi32>
      %88 = vector.shape_cast %85 : vector<128x1xf32> to vector<128x1xf32>
      %89 = vector.broadcast %88 : vector<128x1xf32> to vector<128x128xf32>
      %90 = arith.select %87, %89, %72 : vector<128x128xi1>, vector<128x128xf32>
      %91 = vector.broadcast %85 : vector<128x1xf32> to vector<128x128xf32>
      %92 = arith.cmpf oeq, %76, %91 : vector<128x128xf32>
      %93 = vector.broadcast %cst_9 : f32 to vector<128x128xf32>
      %94 = arith.select %92, %93, %76 : vector<128x128xi1>, vector<128x128xf32>
      %95 = vector.broadcast %85 : vector<128x1xf32> to vector<128x128xf32>
      %96 = arith.cmpf oeq, %80, %95 : vector<128x128xf32>
      %97 = vector.broadcast %cst_9 : f32 to vector<128x128xf32>
      %98 = arith.select %96, %97, %80 : vector<128x128xi1>, vector<128x128xf32>
      %cst_28 = arith.constant dense<0x7F800000> : vector<128xf32>
      %99 = vector.multi_reduction <minimumf>, %94, %cst_28 [1] : vector<128x128xf32> to vector<128xf32>
      %100 = vector.shape_cast %99 : vector<128xf32> to vector<128x1xf32>
      %cst_29 = arith.constant dense<0x7F800000> : vector<128xf32>
      %101 = vector.multi_reduction <minimumf>, %98, %cst_29 [1] : vector<128x128xf32> to vector<128xf32>
      %102 = vector.shape_cast %101 : vector<128xf32> to vector<128x1xf32>
      %103 = arith.minimumf %100, %102 : vector<128x1xf32>
      %c4_i32 = arith.constant 4 : i32
      %104 = vector.broadcast %c4_i32 : i32 to vector<128x128xi32>
      %105 = arith.cmpi eq, %24, %104 : vector<128x128xi32>
      %106 = vector.shape_cast %103 : vector<128x1xf32> to vector<128x1xf32>
      %107 = vector.broadcast %106 : vector<128x1xf32> to vector<128x128xf32>
      %108 = arith.select %105, %107, %90 : vector<128x128xi1>, vector<128x128xf32>
      %109 = vector.broadcast %103 : vector<128x1xf32> to vector<128x128xf32>
      %110 = arith.cmpf oeq, %94, %109 : vector<128x128xf32>
      %111 = vector.broadcast %cst_9 : f32 to vector<128x128xf32>
      %112 = arith.select %110, %111, %94 : vector<128x128xi1>, vector<128x128xf32>
      %113 = vector.broadcast %103 : vector<128x1xf32> to vector<128x128xf32>
      %114 = arith.cmpf oeq, %98, %113 : vector<128x128xf32>
      %115 = vector.broadcast %cst_9 : f32 to vector<128x128xf32>
      %116 = arith.select %114, %115, %98 : vector<128x128xi1>, vector<128x128xf32>
      %cst_30 = arith.constant dense<0x7F800000> : vector<128xf32>
      %117 = vector.multi_reduction <minimumf>, %112, %cst_30 [1] : vector<128x128xf32> to vector<128xf32>
      %118 = vector.shape_cast %117 : vector<128xf32> to vector<128x1xf32>
      %cst_31 = arith.constant dense<0x7F800000> : vector<128xf32>
      %119 = vector.multi_reduction <minimumf>, %116, %cst_31 [1] : vector<128x128xf32> to vector<128xf32>
      %120 = vector.shape_cast %119 : vector<128xf32> to vector<128x1xf32>
      %121 = arith.minimumf %118, %120 : vector<128x1xf32>
      %c5_i32 = arith.constant 5 : i32
      %122 = vector.broadcast %c5_i32 : i32 to vector<128x128xi32>
      %123 = arith.cmpi eq, %24, %122 : vector<128x128xi32>
      %124 = vector.shape_cast %121 : vector<128x1xf32> to vector<128x1xf32>
      %125 = vector.broadcast %124 : vector<128x1xf32> to vector<128x128xf32>
      %126 = arith.select %123, %125, %108 : vector<128x128xi1>, vector<128x128xf32>
      %127 = vector.broadcast %121 : vector<128x1xf32> to vector<128x128xf32>
      %128 = arith.cmpf oeq, %112, %127 : vector<128x128xf32>
      %129 = vector.broadcast %cst_9 : f32 to vector<128x128xf32>
      %130 = arith.select %128, %129, %112 : vector<128x128xi1>, vector<128x128xf32>
      %131 = vector.broadcast %121 : vector<128x1xf32> to vector<128x128xf32>
      %132 = arith.cmpf oeq, %116, %131 : vector<128x128xf32>
      %133 = vector.broadcast %cst_9 : f32 to vector<128x128xf32>
      %134 = arith.select %132, %133, %116 : vector<128x128xi1>, vector<128x128xf32>
      %cst_32 = arith.constant dense<0x7F800000> : vector<128xf32>
      %135 = vector.multi_reduction <minimumf>, %130, %cst_32 [1] : vector<128x128xf32> to vector<128xf32>
      %136 = vector.shape_cast %135 : vector<128xf32> to vector<128x1xf32>
      %cst_33 = arith.constant dense<0x7F800000> : vector<128xf32>
      %137 = vector.multi_reduction <minimumf>, %134, %cst_33 [1] : vector<128x128xf32> to vector<128xf32>
      %138 = vector.shape_cast %137 : vector<128xf32> to vector<128x1xf32>
      %139 = arith.minimumf %136, %138 : vector<128x1xf32>
      %c6_i32 = arith.constant 6 : i32
      %140 = vector.broadcast %c6_i32 : i32 to vector<128x128xi32>
      %141 = arith.cmpi eq, %24, %140 : vector<128x128xi32>
      %142 = vector.shape_cast %139 : vector<128x1xf32> to vector<128x1xf32>
      %143 = vector.broadcast %142 : vector<128x1xf32> to vector<128x128xf32>
      %144 = arith.select %141, %143, %126 : vector<128x128xi1>, vector<128x128xf32>
      %145 = vector.broadcast %139 : vector<128x1xf32> to vector<128x128xf32>
      %146 = arith.cmpf oeq, %130, %145 : vector<128x128xf32>
      %147 = vector.broadcast %cst_9 : f32 to vector<128x128xf32>
      %148 = arith.select %146, %147, %130 : vector<128x128xi1>, vector<128x128xf32>
      %149 = vector.broadcast %139 : vector<128x1xf32> to vector<128x128xf32>
      %150 = arith.cmpf oeq, %134, %149 : vector<128x128xf32>
      %151 = vector.broadcast %cst_9 : f32 to vector<128x128xf32>
      %152 = arith.select %150, %151, %134 : vector<128x128xi1>, vector<128x128xf32>
      %cst_34 = arith.constant dense<0x7F800000> : vector<128xf32>
      %153 = vector.multi_reduction <minimumf>, %148, %cst_34 [1] : vector<128x128xf32> to vector<128xf32>
      %154 = vector.shape_cast %153 : vector<128xf32> to vector<128x1xf32>
      %cst_35 = arith.constant dense<0x7F800000> : vector<128xf32>
      %155 = vector.multi_reduction <minimumf>, %152, %cst_35 [1] : vector<128x128xf32> to vector<128xf32>
      %156 = vector.shape_cast %155 : vector<128xf32> to vector<128x1xf32>
      %157 = arith.minimumf %154, %156 : vector<128x1xf32>
      %c7_i32 = arith.constant 7 : i32
      %158 = vector.broadcast %c7_i32 : i32 to vector<128x128xi32>
      %159 = arith.cmpi eq, %24, %158 : vector<128x128xi32>
      %160 = vector.shape_cast %157 : vector<128x1xf32> to vector<128x1xf32>
      %161 = vector.broadcast %160 : vector<128x1xf32> to vector<128x128xf32>
      %162 = arith.select %159, %161, %144 : vector<128x128xi1>, vector<128x128xf32>
      %c0_36 = arith.constant 0 : index
      %c0_37 = arith.constant 0 : index
      %163 = vector.load %arg6[%c0_36, %c0_37] : memref<128x128xf32, #tpu.memory_space<vmem>>, vector<128x128xf32>
      tpu.vector_store %arg6[%c0_36, %c0_37], %162 {strides = array<i32>} : memref<128x128xf32, #tpu.memory_space<vmem>>, vector<128x128xf32>,
    } else {
    }
    %c1_i32_11 = arith.constant 1 : i32
    %18 = arith.cmpi sge, %arg2, %c1_i32_11 : i32
    %19 = arith.extui %18 : i1 to i32
    %cst_12 = arith.constant 3.000000e+38 : f32
    %c0_i32_13 = arith.constant 0 : i32
    %20 = arith.cmpi ne, %19, %c0_i32_13 : i32
    scf.if %20 {
      %c0_16 = arith.constant 0 : index
      %c0_17 = arith.constant 0 : index
      %24 = vector.load %arg6[%c0_16, %c0_17] : memref<128x128xf32, #tpu.memory_space<vmem>>, vector<128x128xf32>
      %25 = tpu.iota {dimensions = array<i32: 1>} : vector<128x128xi32>
      %c8_i32 = arith.constant 8 : i32
      %26 = vector.broadcast %c8_i32 : i32 to vector<128x128xi32>
      %27 = arith.cmpi slt, %25, %26 : vector<128x128xi32>
      %cst_18 = arith.constant 0.000000e+00 : f32
      %28 = arith.subf %cst_18, %cst_12 : f32
      %29 = vector.broadcast %28 : f32 to vector<128x128xf32>
      %30 = arith.select %27, %24, %29 : vector<128x128xi1>, vector<128x128xf32>
      %cst_19 = arith.constant dense<0xFF800000> : vector<128xf32>
      %31 = vector.multi_reduction <maximumf>, %30, %cst_19 [1] : vector<128x128xf32> to vector<128xf32>
      %32 = vector.shape_cast %31 : vector<128xf32> to vector<128x1xf32>
      %cst_20 = arith.constant dense<0x7F800000> : vector<128xf32>
      %33 = vector.multi_reduction <minimumf>, %24, %cst_20 [1] : vector<128x128xf32> to vector<128xf32>
      %34 = vector.shape_cast %33 : vector<128xf32> to vector<128x1xf32>
      %35 = vector.broadcast %32 : vector<128x1xf32> to vector<128x128xf32>
      %36 = arith.cmpf ole, %14, %35 : vector<128x128xf32>
      %37 = vector.broadcast %34 : vector<128x1xf32> to vector<128x128xf32>
      %38 = arith.subf %37, %14 : vector<128x128xf32>
      %39 = math.exp %38 : vector<128x128xf32>
      %cst_21 = arith.constant 0.000000e+00 : f32
      %40 = vector.broadcast %cst_21 : f32 to vector<128x128xf32>
      %41 = arith.select %36, %39, %40 : vector<128x128xi1>, vector<128x128xf32>
      %cst_22 = arith.constant 1.000000e+00 : f32
      %42 = vector.broadcast %cst_22 : f32 to vector<1x128xf32>
      %c0_23 = arith.constant 0 : index
      %c0_24 = arith.constant 0 : index
      %43 = vector.load %arg7[%c0_23, %c0_24] : memref<3x128xf32, #tpu.memory_space<vmem>>, vector<3x128xf32>
      %cst_25 = arith.constant dense<0.000000e+00> : vector<3x128xf32>
      %44 = tpu.matmul %4, %41, %cst_25 {dimension_numbers = #tpu.dot_dimension_numbers<[1], [1], [0], [0], [0, 0, 1, 0], [], []>} : vector<3x128xf32>, vector<128x128xf32>, vector<3x128xf32> -> vector<3x128xf32>
      %45 = arith.addf %43, %44 : vector<3x128xf32>
      %c0_26 = arith.constant 0 : index
      %c0_27 = arith.constant 0 : index
      %46 = vector.load %arg7[%c0_26, %c0_27] : memref<3x128xf32, #tpu.memory_space<vmem>>, vector<3x128xf32>
      tpu.vector_store %arg7[%c0_26, %c0_27], %45 {strides = array<i32>} : memref<3x128xf32, #tpu.memory_space<vmem>>, vector<3x128xf32>,
      %c0_28 = arith.constant 0 : index
      %c0_29 = arith.constant 0 : index
      %47 = vector.load %arg8[%c0_28, %c0_29] : memref<1x128xf32, #tpu.memory_space<vmem>>, vector<1x128xf32>
      %cst_30 = arith.constant dense<0.000000e+00> : vector<1x128xf32>
      %48 = tpu.matmul %42, %41, %cst_30 {dimension_numbers = #tpu.dot_dimension_numbers<[1], [1], [0], [0], [0, 0, 1, 0], [], []>} : vector<1x128xf32>, vector<128x128xf32>, vector<1x128xf32> -> vector<1x128xf32>
      %49 = arith.addf %47, %48 : vector<1x128xf32>
      %c0_31 = arith.constant 0 : index
      %c0_32 = arith.constant 0 : index
      %50 = vector.load %arg8[%c0_31, %c0_32] : memref<1x128xf32, #tpu.memory_space<vmem>>, vector<1x128xf32>
      tpu.vector_store %arg8[%c0_31, %c0_32], %49 {strides = array<i32>} : memref<1x128xf32, #tpu.memory_space<vmem>>, vector<1x128xf32>,
    } else {
    }
    %c1_i32_14 = arith.constant 1 : i32
    %21 = arith.cmpi eq, %arg2, %c1_i32_14 : i32
    %22 = arith.extui %21 : i1 to i32
    %c0_i32_15 = arith.constant 0 : i32
    %23 = arith.cmpi ne, %22, %c0_i32_15 : i32
    scf.if %23 {
      %c0_16 = arith.constant 0 : index
      %c0_17 = arith.constant 0 : index
      %24 = vector.load %arg7[%c0_16, %c0_17] : memref<3x128xf32, #tpu.memory_space<vmem>>, vector<3x128xf32>
      %c0_18 = arith.constant 0 : index
      %c0_19 = arith.constant 0 : index
      %25 = vector.load %arg8[%c0_18, %c0_19] : memref<1x128xf32, #tpu.memory_space<vmem>>, vector<1x128xf32>
      %26 = vector.broadcast %25 : vector<1x128xf32> to vector<3x128xf32>
      %27 = arith.divf %24, %26 : vector<3x128xf32>
      %c0_20 = arith.constant 0 : index
      %c0_21 = arith.constant 0 : index
      %c0_22 = arith.constant 0 : index
      %28 = vector.load %arg5[%c0_20, %c0_21, %c0_22] : memref<1x3x128xf32, #tpu.memory_space<vmem>>, vector<1x3x128xf32>
      %29 = vector.shape_cast %28 : vector<1x3x128xf32> to vector<3x128xf32>
      %30 = vector.shape_cast %27 : vector<3x128xf32> to vector<1x3x128xf32>
      tpu.vector_store %arg5[%c0_20, %c0_21, %c0_22], %30 {strides = array<i32>} : memref<1x3x128xf32, #tpu.memory_space<vmem>>, vector<1x3x128xf32>,
    } else {
    }
    return
  }
  func.func @transform_0(%arg0: i32, %arg1: i32, %arg2: i32) -> (i32, i32, i32) {
    %c1_i32 = arith.constant 1 : i32
    %c0_i32 = arith.constant 0 : i32
    %0 = arith.cmpi eq, %c1_i32, %c0_i32 : i32
    %c1_i32_0 = arith.constant 1 : i32
    %1 = arith.select %0, %c1_i32_0, %c1_i32 : i32
    %2 = arith.remsi %arg2, %1 : i32
    %c0_i32_1 = arith.constant 0 : i32
    %3 = arith.cmpi ne, %2, %c0_i32_1 : i32
    %c0_i32_2 = arith.constant 0 : i32
    %4 = arith.cmpi slt, %2, %c0_i32_2 : i32
    %c0_i32_3 = arith.constant 0 : i32
    %5 = arith.cmpi slt, %1, %c0_i32_3 : i32
    %6 = arith.xori %4, %5 : i1
    %7 = arith.andi %6, %3 : i1
    %8 = arith.addi %2, %1 : i32
    %9 = arith.select %7, %8, %2 : i32
    %c0_i32_4 = arith.constant 0 : i32
    %c0_i32_5 = arith.constant 0 : i32
    return %arg0, %c0_i32_4, %9 : i32, i32, i32
  }
  func.func @transform_1(%arg0: i32, %arg1: i32, %arg2: i32) -> (i32, i32, i32) {
    %c0_i32 = arith.constant 0 : i32
    %c0_i32_0 = arith.constant 0 : i32
    return %arg0, %arg1, %c0_i32 : i32, i32, i32
  }
  func.func @transform_2(%arg0: i32, %arg1: i32, %arg2: i32) -> (i32, i32, i32) {
    %c0_i32 = arith.constant 0 : i32
    %c0_i32_0 = arith.constant 0 : i32
    return %arg0, %c0_i32, %arg1 : i32, i32, i32
  }
}

</mosaic_0001>

<llo_original>
// kernel: tpu_custom_call.1
$region0: #{tpu_custom_call.1}
  #allocation0 [shape = 'u32[]', space=smem, size = 0x4, offset = 0x4, fixed_abs, tag = 'smem constant byte address 0x4 - core index']
  #allocation1 [shape = 'u32[72,128]{1,0:T(1,128)}', space=vmem, size = 0x9000, scoped, tag = 'internal scratch']
  #allocation2 [shape = 'f32[128,128]{1,0:T(8,128)}', space=vmem, size = 0x10000, scoped, tag = 'scratch operand']
  #allocation3 [shape = 'f32[3,128]{1,0:T(4,128)}', space=vmem, size = 0x800, scoped, tag = 'scratch operand']
  #allocation4 [shape = 'f32[1,128]{1,0:T(1,128)}', space=vmem, size = 0x200, scoped, tag = 'scratch operand']
  %s0 = inlined_call_operand.vmem [shape: f32[2,3,128], index: 0, kind: input, shape index: {}]
  %s1 = inlined_call_operand.vmem [shape: f32[2,128,3], index: 1, kind: input, shape index: {}]
  %s2 = inlined_call_operand.vmem [shape: f32[2,3,128], index: 2, kind: output, shape index: {}]
  %s3 = sld [smem:[#allocation0]]
  $region57: #{tpu_custom_call.1} parent=0
    _
  %s5 = ssub.s32 1, %s3
  %s6 = scalar_select 0, %s5, %s3
  loop: start=0, step=1, limit=6
  $region2: #{tpu_custom_call.1} parent=0 // loop_pre_header
    _
  $region3: #{tpu_custom_call.1} parent=0 // loop_header
    %s8 = sphi 0, %s12
    %p9 = scmp.ge.s32.totalorder %s8, 6
    %s15 = sphi 0, %s34
    %s16 = sphi 0, %s30
    %s17 = sphi 0, %s26
    %s18 = sphi 0, %s15
    %s19 = sphi 0, %s16
    %s20 = sphi 0, %s17
    %s21 = sphi 0, %s18
    %s22 = sphi 0, %s19
    %s23 = sphi 0, %s20
    %s37 = sphi 0, %s39
    %s40 = sphi 0, %s37
    %s41 = sphi 0, %s40
    %s57 = sphi 0, %s41
    %s65 = sphi 0, %s67
    %s68 = sphi 0, %s65
    %s69 = sphi 0, %s68
    %s85 = sphi 0, %s69
    %s93 = sphi 0, %s95
    %s96 = sphi 0, %s93
    %s97 = sphi 0, %s96
    %s113 = sphi 0, %s97
  $region4: #{tpu_custom_call.1} parent=0 // loop_header_branch
    %11 = sbr.rel (%p9) target = $region8
  $region5: #{tpu_custom_call.1} parent=0 // loop_body
    %s13 = ssub.s32 %s8, 1
    %s14 = ssub.s32 %s8, 2
    %s24 = sadd.s32 1, %s17
    %p25 = scmp.ge.s32.totalorder %s24, 2
    %s26 = scalar_select %p25, 0, %s24
    %s27 = sadd.s32 1, %s16
    %s28 = scalar_select %p25, %s27, %s16
    %p29 = scmp.ge.s32.totalorder %s28, 1
    %s30 = scalar_select %p29, 0, %s28
    %s31 = sadd.s32 1, %s15
    %s32 = scalar_select %p29, %s31, %s15
    %p33 = scmp.ge.s32.totalorder %s32, 2
    %s34 = scalar_select %p33, 0, %s32
    %s35 = ssub.s32 %s15, %s34
    %p36 = scmp.eq.s32.totalorder %s35, 0
    %s38 = sadd.s32 %s37, 1
    %s39 = scalar_select %p36, %s37, %s38
    %p42 = pneg %p36
    %p43 = scmp.eq.s32.totalorder %s8, 3
    %p44 = por %p42, %p43
    %p45 = scmp.ne.s32.totalorder %s37, %s40
    %p46 = scmp.eq.s32.totalorder %s8, 0
    %p47 = por %p45, %p46
    %p48 = scmp.ne.s32.totalorder %s37, %s40
    %p49 = scmp.eq.s32.totalorder %s13, 3
    %p50 = por %p48, %p49
    %p51 = scmp.ne.s32.totalorder %s40, %s41
    %p52 = scmp.eq.s32.totalorder %s13, 0
    %p53 = por %p51, %p52
    %p54 = scmp.ne.s32.totalorder %s40, %s41
    %p55 = scmp.eq.s32.totalorder %s14, 3
    %p56 = por %p54, %p55
    %p58 = scmp.ne.s32.totalorder %s41, %s57
    %p59 = scmp.eq.s32.totalorder %s14, 0
    %p60 = por %p58, %p59
    %s61 = ssub.s32 %s15, %s34
    %s62 = ssub.s32 %s16, %s30
    %s63 = sor.u32 %s61, %s62
    %p64 = scmp.eq.s32.totalorder %s63, 0
    %s66 = sadd.s32 %s65, 1
    %s67 = scalar_select %p64, %s65, %s66
    %p70 = pneg %p64
    %p71 = scmp.eq.s32.totalorder %s8, 3
    %p72 = por %p70, %p71
    %p73 = scmp.ne.s32.totalorder %s65, %s68
    %p74 = scmp.eq.s32.totalorder %s8, 0
    %p75 = por %p73, %p74
    %p76 = scmp.ne.s32.totalorder %s65, %s68
    %p77 = scmp.eq.s32.totalorder %s13, 3
    %p78 = por %p76, %p77
    %p79 = scmp.ne.s32.totalorder %s68, %s69
    %p80 = scmp.eq.s32.totalorder %s13, 0
    %p81 = por %p79, %p80
    %p82 = scmp.ne.s32.totalorder %s68, %s69
    %p83 = scmp.eq.s32.totalorder %s14, 3
    %p84 = por %p82, %p83
    %p86 = scmp.ne.s32.totalorder %s69, %s85
    %p87 = scmp.eq.s32.totalorder %s14, 0
    %p88 = por %p86, %p87
    %s89 = ssub.s32 %s15, %s34
    %s90 = ssub.s32 %s16, %s30
    %s91 = sor.u32 %s89, %s90
    %p92 = scmp.eq.s32.totalorder %s91, 0
    %s94 = sadd.s32 %s93, 1
    %s95 = scalar_select %p92, %s93, %s94
    %p98 = pneg %p92
    %p99 = scmp.eq.s32.totalorder %s8, 3
    %p100 = por %p98, %p99
    %p101 = scmp.ne.s32.totalorder %s93, %s96
    %p102 = scmp.eq.s32.totalorder %s8, 0
    %p103 = por %p101, %p102
    %p104 = scmp.ne.s32.totalorder %s93, %s96
    %p105 = scmp.eq.s32.totalorder %s13, 3
    %p106 = por %p104, %p105
    %p107 = scmp.ne.s32.totalorder %s96, %s97
    %p108 = scmp.eq.s32.totalorder %s13, 0
    %p109 = por %p107, %p108
    %p110 = scmp.ne.s32.totalorder %s96, %s97
    %p111 = scmp.eq.s32.totalorder %s14, 3
    %p112 = por %p110, %p111
    %p114 = scmp.ne.s32.totalorder %s97, %s113
    %p115 = scmp.eq.s32.totalorder %s14, 0
    %p116 = por %p114, %p115
    %p117 = scmp.le.s32.totalorder 1, %s8
    %p118 = scmp.lt.s32.totalorder %s8, 5
    %p119 = pnand %p117, %p118
    %p120 = pneg %p119
    // Predicated region
    $region9: #{tpu_custom_call.1} parent=5 // pred_check
      _
    $region10: #{tpu_custom_call.1} parent=5 // pred_check_branch
      %122 = sbr.rel (%p119) target = $region12
    $region11: #{tpu_custom_call.1} parent=5 // pred_region
      %s123 = ssub.s32 %s8, 1
    $region12: #{tpu_custom_call.1} parent=5 // pred_fallthru
      _
    %p124 = scmp.lt.s32.totalorder %s8, 4
    // Predicated region
    $region13: #{tpu_custom_call.1} parent=5 // pred_check
      %p125 = pneg %p124
    $region14: #{tpu_custom_call.1} parent=5 // pred_check_branch
      %127 = sbr.rel (%p125) target = $region16
    $region15: #{tpu_custom_call.1} parent=5 // pred_region
      // Predicated region
      $region17: #{tpu_custom_call.1} parent=15 // pred_check
        %p128 = pneg %p47
      $region18: #{tpu_custom_call.1} parent=15 // pred_check_branch
        %130 = sbr.rel (%p128) target = $region20
      $region19: #{tpu_custom_call.1} parent=15 // pred_region
        %p131 = scmp.lt.s32.totalorder %s15, 1
        %s132 = scalar_select %p131, %s15, 1
        %s133 = smul.addr %s132, 4
        %s134 = scalar_lea.vmem %s0, %s133
      $region20: #{tpu_custom_call.1} parent=15 // pred_fallthru
        _
      // Predicated region
      $region21: #{tpu_custom_call.1} parent=15 // pred_check
        %p135 = pneg %p75
      $region22: #{tpu_custom_call.1} parent=15 // pred_check_branch
        %137 = sbr.rel (%p135) target = $region24
      $region23: #{tpu_custom_call.1} parent=15 // pred_region
        %s138 = smul.u32 16, %s16
        %p139 = scmp.lt.s32.totalorder %s15, 1
        %s140 = scalar_select %p139, %s15, 1
        %p141 = scmp.lt.s32.totalorder %s138, 15
        %s142 = scalar_select %p141, %s138, 15
        %s143 = smul.addr %s140, 16
        %s144 = sadd.s32 %s142, %s143
        %s145 = smul.addr %s144, 8
        %s146 = scalar_lea.vmem %s1, %s145
        %s147 = smul.u32 16, %s16
      $region24: #{tpu_custom_call.1} parent=15 // pred_fallthru
        _
    $region16: #{tpu_custom_call.1} parent=5 // pred_fallthru
      _
    %p148 = scmp.le.s32.totalorder 1, %s8
    %p149 = scmp.lt.s32.totalorder %s8, 5
    %p150 = pnand %p148, %p149
    %p151 = pneg %p150
    // Predicated region
    $region25: #{tpu_custom_call.1} parent=5 // pred_check
      _
    $region26: #{tpu_custom_call.1} parent=5 // pred_check_branch
      %153 = sbr.rel (%p150) target = $region28
    $region27: #{tpu_custom_call.1} parent=5 // pred_region
      %s154 = ssub.s32 %s8, 1
      %p155 = scmp.lt.s32.totalorder %s18, 1
      %s156 = scalar_select %p155, %s18, 1
      %s157 = smul.addr %s156, 4
      %s158 = scalar_lea.vmem %s0, %s157
      %p159 = pneg %p53
      %p160 = pneg %p50
      %s161 = smul.u32 16, %s19
      %p162 = scmp.lt.s32.totalorder %s18, 1
      %s163 = scalar_select %p162, %s18, 1
      %p164 = scmp.lt.s32.totalorder %s161, 15
      %s165 = scalar_select %p164, %s161, 15
      %s166 = smul.addr %s163, 16
      %s167 = sadd.s32 %s165, %s166
      %s168 = smul.addr %s167, 8
      %s169 = scalar_lea.vmem %s1, %s168
      %p170 = pneg %p81
      %p171 = pneg %p78
      %p172 = pneg %p109
      %p173 = pneg %p106
      %p174 = scmp.lt.s32.totalorder %s18, 1
      %s175 = scalar_select %p174, %s18, 1
      %p176 = scmp.lt.s32.totalorder %s19, 0
      %s177 = scalar_select %p176, %s19, 0
      %s178 = sadd.s32 %s177, %s175
      %s179 = smul.addr %s178, 4
      %s180 = scalar_lea.vmem %s2, %s179
      %p181 = scmp.lt.s32.totalorder %s18, 1
      %s182 = scalar_select %p181, %s18, 1
      %s183 = smul.addr %s182, 4
      %s184 = scalar_lea.vmem %s0, %s183
      %s185 = smul.u32 16, %s19
      %p186 = scmp.lt.s32.totalorder %s18, 1
      %s187 = scalar_select %p186, %s18, 1
      %p188 = scmp.lt.s32.totalorder %s185, 15
      %s189 = scalar_select %p188, %s185, 15
      %s190 = smul.addr %s187, 16
      %s191 = sadd.s32 %s189, %s190
      %s192 = smul.addr %s191, 8
      %s193 = scalar_lea.vmem %s1, %s192
      %s194 = smul.u32 16, %s19
      %p195 = scmp.lt.s32.totalorder %s18, 1
      %s196 = scalar_select %p195, %s18, 1
      %p197 = scmp.lt.s32.totalorder %s19, 0
      %s198 = scalar_select %p197, %s19, 0
      %s199 = sadd.s32 %s198, %s196
      %s200 = smul.addr %s199, 4
      %s201 = scalar_lea.vmem %s2, %s200
      %p202 = scmp.eq.s32.totalorder %s20, 0
      // Predicated region
      $region29: #{tpu_custom_call.1} parent=27 // pred_check
        %p203 = pneg %p202
      $region30: #{tpu_custom_call.1} parent=27 // pred_check_branch
        %205 = sbr.rel (%p203) target = $region32
      $region31: #{tpu_custom_call.1} parent=27 // pred_region
        %206 = vst [vmem:[#allocation2] sm:$0xff] 3e+38
        %207 = vst [vmem:[#allocation2 + $0x8] sm:$0xff] 3e+38
        %208 = vst [vmem:[#allocation2 + $0x10] sm:$0xff] 3e+38
        %209 = vst [vmem:[#allocation2 + $0x18] sm:$0xff] 3e+38
        %210 = vst [vmem:[#allocation2 + $0x20] sm:$0xff] 3e+38
        %211 = vst [vmem:[#allocation2 + $0x28] sm:$0xff] 3e+38
        %212 = vst [vmem:[#allocation2 + $0x30] sm:$0xff] 3e+38
        %213 = vst [vmem:[#allocation2 + $0x38] sm:$0xff] 3e+38
        %214 = vst [vmem:[#allocation2 + $0x40] sm:$0xff] 3e+38
        %215 = vst [vmem:[#allocation2 + $0x48] sm:$0xff] 3e+38
        %216 = vst [vmem:[#allocation2 + $0x50] sm:$0xff] 3e+38
        %217 = vst [vmem:[#allocation2 + $0x58] sm:$0xff] 3e+38
        %218 = vst [vmem:[#allocation2 + $0x60] sm:$0xff] 3e+38
        %219 = vst [vmem:[#allocation2 + $0x68] sm:$0xff] 3e+38
        %220 = vst [vmem:[#allocation2 + $0x70] sm:$0xff] 3e+38
        %221 = vst [vmem:[#allocation2 + $0x78] sm:$0xff] 3e+38
        %222 = vst [vmem:[#allocation3] sm:$0x7] 0.0
        %223 = vst [vmem:[#allocation4] sm:$0x1] 0.0
      $region32: #{tpu_custom_call.1} parent=27 // pred_fallthru
        _
      %v224 = vld [vmem:[%s184] sm:$0x7]
      %v225 = vld [vmem:[%s193] sm:$0xff]
      %v226 = vld [vmem:[%s193 + $0x8] sm:$0xff]
      %v227 = vld [vmem:[%s193 + $0x10] sm:$0xff]
      %v228 = vld [vmem:[%s193 + $0x18] sm:$0xff]
      %v229 = vld [vmem:[%s193 + $0x20] sm:$0xff]
      %v230 = vld [vmem:[%s193 + $0x28] sm:$0xff]
      %v231 = vld [vmem:[%s193 + $0x30] sm:$0xff]
      %v232 = vld [vmem:[%s193 + $0x38] sm:$0xff]
      %v233 = vld [vmem:[%s193 + $0x40] sm:$0xff]
      %v234 = vld [vmem:[%s193 + $0x48] sm:$0xff]
      %v235 = vld [vmem:[%s193 + $0x50] sm:$0xff]
      %v236 = vld [vmem:[%s193 + $0x58] sm:$0xff]
      %v237 = vld [vmem:[%s193 + $0x60] sm:$0xff]
      %v238 = vld [vmem:[%s193 + $0x68] sm:$0xff]
      %v239 = vld [vmem:[%s193 + $0x70] sm:$0xff]
      %v240 = vld [vmem:[%s193 + $0x78] sm:$0xff]
      %v241 = vmul.f32 %v225, 2.0
      %v242 = vmul.f32 %v226, 2.0
      %v243 = vmul.f32 %v227, 2.0
      %v244 = vmul.f32 %v228, 2.0
      %v245 = vmul.f32 %v229, 2.0
      %v246 = vmul.f32 %v230, 2.0
      %v247 = vmul.f32 %v231, 2.0
      %v248 = vmul.f32 %v232, 2.0
      %v249 = vmul.f32 %v233, 2.0
      %v250 = vmul.f32 %v234, 2.0
      %v251 = vmul.f32 %v235, 2.0
      %v252 = vmul.f32 %v236, 2.0
      %v253 = vmul.f32 %v237, 2.0
      %v254 = vmul.f32 %v238, 2.0
      %v255 = vmul.f32 %v239, 2.0
      %v256 = vmul.f32 %v240, 2.0
      %v257 = vmul.f32 %v224, %v224
      %vm258 = vcmask 1042432
      %v259 = vsel %vm258, %v257, 0.0
      %v260 = vrot.slane %v259, 4
      %v261 = vadd.f32 %v259, %v260
      %v262 = vrot.slane %v261, 2
      %v263 = vadd.f32 %v261, %v262
      %v264 = vrot.slane %v263, 1
      %v265 = vadd.f32 %v263, %v264
      %vm266 = vcmask 23552
      %v268 = vsel %vm266, %v241, 0
      %v271 = vsel %vm266, %v242, 0
      %v274 = vsel %vm266, %v243, 0
      %v277 = vsel %vm266, %v244, 0
      %v280 = vsel %vm266, %v245, 0
      %v283 = vsel %vm266, %v246, 0
      %v286 = vsel %vm266, %v247, 0
      %v289 = vsel %vm266, %v248, 0
      %v292 = vsel %vm266, %v249, 0
      %v295 = vsel %vm266, %v250, 0
      %v298 = vsel %vm266, %v251, 0
      %v301 = vsel %vm266, %v252, 0
      %v304 = vsel %vm266, %v253, 0
      %v307 = vsel %vm266, %v254, 0
      %v310 = vsel %vm266, %v255, 0
      %v313 = vsel %vm266, %v256, 0
      %v316 = vsel %vm258, %v224, 0
      %318 = vmatpush.msra.mxu0 0.0
      %319 = vmatpush.msra.mxu0 0.0
      %320 = vmatpush.msra.mxu0 0.0
      %321 = vmatpush.msra.mxu0 0.0
      %322 = vmatpush.msra.mxu0 0.0
      %323 = vmatpush.msra.mxu0 0.0
      %324 = vmatpush.msra.mxu0 0.0
      %325 = vmatpush.msra.mxu0 0.0
      %326 = vmatpush.msra.mxu0 0.0
      %327 = vmatpush.msra.mxu0 0.0
      %328 = vmatpush.msra.mxu0 0.0
      %329 = vmatpush.msra.mxu0 0.0
      %330 = vmatpush.msra.mxu0 0.0
      %331 = vmatpush.msra.mxu0 0.0
      %332 = vmatpush.msra.mxu0 0.0
      %333 = vmatpush.msra.mxu0 %v316
      %334 = vmatmul.f32.gmra.mxu0 %v268
      %v335 = vpop.f32.mrf.mxu0
      %v336 = vadd.f32 0.0, %v335
      %337 = vmatmul.f32.gmra.mxu0 %v271
      %v338 = vpop.f32.mrf.mxu0
      %v339 = vadd.f32 0.0, %v338
      %340 = vmatmul.f32.gmra.mxu0 %v274
      %v341 = vpop.f32.mrf.mxu0
      %v342 = vadd.f32 0.0, %v341
      %343 = vmatmul.f32.gmra.mxu0 %v277
      %v344 = vpop.f32.mrf.mxu0
      %v345 = vadd.f32 0.0, %v344
      %346 = vmatmul.f32.gmra.mxu0 %v280
      %v347 = vpop.f32.mrf.mxu0
      %v348 = vadd.f32 0.0, %v347
      %349 = vmatmul.f32.gmra.mxu0 %v283
      %v350 = vpop.f32.mrf.mxu0
      %v351 = vadd.f32 0.0, %v350
      %352 = vmatmul.f32.gmra.mxu0 %v286
      %v353 = vpop.f32.mrf.mxu0
      %v354 = vadd.f32 0.0, %v353
      %355 = vmatmul.f32.gmra.mxu0 %v289
      %v356 = vpop.f32.mrf.mxu0
      %v357 = vadd.f32 0.0, %v356
      %358 = vmatmul.f32.gmra.mxu0 %v292
      %v359 = vpop.f32.mrf.mxu0
      %v360 = vadd.f32 0.0, %v359
      %361 = vmatmul.f32.gmra.mxu0 %v295
      %v362 = vpop.f32.mrf.mxu0
      %v363 = vadd.f32 0.0, %v362
      %364 = vmatmul.f32.gmra.mxu0 %v298
      %v365 = vpop.f32.mrf.mxu0
      %v366 = vadd.f32 0.0, %v365
      %367 = vmatmul.f32.gmra.mxu0 %v301
      %v368 = vpop.f32.mrf.mxu0
      %v369 = vadd.f32 0.0, %v368
      %370 = vmatmul.f32.gmra.mxu0 %v304
      %v371 = vpop.f32.mrf.mxu0
      %v372 = vadd.f32 0.0, %v371
      %373 = vmatmul.f32.gmra.mxu0 %v307
      %v374 = vpop.f32.mrf.mxu0
      %v375 = vadd.f32 0.0, %v374
      %376 = vmatmul.f32.gmra.mxu0 %v310
      %v377 = vpop.f32.mrf.mxu0
      %v378 = vadd.f32 0.0, %v377
      %379 = vmatmul.f32.gmra.mxu0 %v313
      %v380 = vpop.f32.mrf.mxu0
      %v381 = vadd.f32 0.0, %v380
      %382 = vdwg.mxu0
      %v383 = vsub.f32 %v265, %v336
      %v384 = vsub.f32 %v265, %v339
      %v385 = vsub.f32 %v265, %v342
      %v386 = vsub.f32 %v265, %v345
      %v387 = vsub.f32 %v265, %v348
      %v388 = vsub.f32 %v265, %v351
      %v389 = vsub.f32 %v265, %v354
      %v390 = vsub.f32 %v265, %v357
      %v391 = vsub.f32 %v265, %v360
      %v392 = vsub.f32 %v265, %v363
      %v393 = vsub.f32 %v265, %v366
      %v394 = vsub.f32 %v265, %v369
      %v395 = vsub.f32 %v265, %v372
      %v396 = vsub.f32 %v265, %v375
      %v397 = vsub.f32 %v265, %v378
      %v398 = vsub.f32 %v265, %v381
      %p399 = scmp.lt.s32.totalorder %s20, 1
      // Predicated region
      $region33: #{tpu_custom_call.1} parent=27 // pred_check
        %p400 = pneg %p399
      $region34: #{tpu_custom_call.1} parent=27 // pred_check_branch
        %402 = sbr.rel (%p400) target = $region36
      $region35: #{tpu_custom_call.1} parent=27 // pred_region
        %v403 = vlaneseq
        %v404 = vand.u32 %v403, 127
        %v405 = vld [vmem:[#allocation2] sm:$0xff]
        %v406 = vld [vmem:[#allocation2 + $0x8] sm:$0xff]
        %v407 = vld [vmem:[#allocation2 + $0x10] sm:$0xff]
        %v408 = vld [vmem:[#allocation2 + $0x18] sm:$0xff]
        %v409 = vld [vmem:[#allocation2 + $0x20] sm:$0xff]
        %v410 = vld [vmem:[#allocation2 + $0x28] sm:$0xff]
        %v411 = vld [vmem:[#allocation2 + $0x30] sm:$0xff]
        %v412 = vld [vmem:[#allocation2 + $0x38] sm:$0xff]
        %v413 = vld [vmem:[#allocation2 + $0x40] sm:$0xff]
        %v414 = vld [vmem:[#allocation2 + $0x48] sm:$0xff]
        %v415 = vld [vmem:[#allocation2 + $0x50] sm:$0xff]
        %v416 = vld [vmem:[#allocation2 + $0x58] sm:$0xff]
        %v417 = vld [vmem:[#allocation2 + $0x60] sm:$0xff]
        %v418 = vld [vmem:[#allocation2 + $0x68] sm:$0xff]
        %v419 = vld [vmem:[#allocation2 + $0x70] sm:$0xff]
        %v420 = vld [vmem:[#allocation2 + $0x78] sm:$0xff]
        %421 = vmin.xlane.f32.xlu0 %v405
        %v422 = vpop.xlane.xlu0 %421
        %423 = vmin.xlane.f32.xlu0 %v406
        %v424 = vpop.xlane.xlu0 %423
        %425 = vmin.xlane.f32.xlu0 %v407
        %v426 = vpop.xlane.xlu0 %425
        %427 = vmin.xlane.f32.xlu0 %v408
        %v428 = vpop.xlane.xlu0 %427
        %429 = vmin.xlane.f32.xlu0 %v409
        %v430 = vpop.xlane.xlu0 %429
        %431 = vmin.xlane.f32.xlu0 %v410
        %v432 = vpop.xlane.xlu0 %431
        %433 = vmin.xlane.f32.xlu0 %v411
        %v434 = vpop.xlane.xlu0 %433
        %435 = vmin.xlane.f32.xlu0 %v412
        %v436 = vpop.xlane.xlu0 %435
        %437 = vmin.xlane.f32.xlu0 %v413
        %v438 = vpop.xlane.xlu0 %437
        %439 = vmin.xlane.f32.xlu0 %v414
        %v440 = vpop.xlane.xlu0 %439
        %441 = vmin.xlane.f32.xlu0 %v415
        %v442 = vpop.xlane.xlu0 %441
        %443 = vmin.xlane.f32.xlu0 %v416
        %v444 = vpop.xlane.xlu0 %443
        %445 = vmin.xlane.f32.xlu0 %v417
        %v446 = vpop.xlane.xlu0 %445
        %447 = vmin.xlane.f32.xlu0 %v418
        %v448 = vpop.xlane.xlu0 %447
        %449 = vmin.xlane.f32.xlu0 %v419
        %v450 = vpop.xlane.xlu0 %449
        %451 = vmin.xlane.f32.xlu0 %v420
        %v452 = vpop.xlane.xlu0 %451
        %453 = vmin.xlane.f32.xlu0 %v383
        %v454 = vpop.xlane.xlu0 %453
        %455 = vmin.xlane.f32.xlu0 %v384
        %v456 = vpop.xlane.xlu0 %455
        %457 = vmin.xlane.f32.xlu0 %v385
        %v458 = vpop.xlane.xlu0 %457
        %459 = vmin.xlane.f32.xlu0 %v386
        %v460 = vpop.xlane.xlu0 %459
        %461 = vmin.xlane.f32.xlu0 %v387
        %v462 = vpop.xlane.xlu0 %461
        %463 = vmin.xlane.f32.xlu0 %v388
        %v464 = vpop.xlane.xlu0 %463
        %465 = vmin.xlane.f32.xlu0 %v389
        %v466 = vpop.xlane.xlu0 %465
        %467 = vmin.xlane.f32.xlu0 %v390
        %v468 = vpop.xlane.xlu0 %467
        %469 = vmin.xlane.f32.xlu0 %v391
        %v470 = vpop.xlane.xlu0 %469
        %471 = vmin.xlane.f32.xlu0 %v392
        %v472 = vpop.xlane.xlu0 %471
        %473 = vmin.xlane.f32.xlu0 %v393
        %v474 = vpop.xlane.xlu0 %473
        %475 = vmin.xlane.f32.xlu0 %v394
        %v476 = vpop.xlane.xlu0 %475
        %477 = vmin.xlane.f32.xlu0 %v395
        %v478 = vpop.xlane.xlu0 %477
        %479 = vmin.xlane.f32.xlu0 %v396
        %v480 = vpop.xlane.xlu0 %479
        %481 = vmin.xlane.f32.xlu0 %v397
        %v482 = vpop.xlane.xlu0 %481
        %483 = vmin.xlane.f32.xlu0 %v398
        %v484 = vpop.xlane.xlu0 %483
        %v485 = vmin.f32 %v422, %v454
        %v486 = vmin.f32 %v424, %v456
        %v487 = vmin.f32 %v426, %v458
        %v488 = vmin.f32 %v428, %v460
        %v489 = vmin.f32 %v430, %v462
        %v490 = vmin.f32 %v432, %v464
        %v491 = vmin.f32 %v434, %v466
        %v492 = vmin.f32 %v436, %v468
        %v493 = vmin.f32 %v438, %v470
        %v494 = vmin.f32 %v440, %v472
        %v495 = vmin.f32 %v442, %v474
        %v496 = vmin.f32 %v444, %v476
        %v497 = vmin.f32 %v446, %v478
        %v498 = vmin.f32 %v448, %v480
        %v499 = vmin.f32 %v450, %v482
        %v500 = vmin.f32 %v452, %v484
        %vm501 = vcmp.eq.s32.totalorder %v404, 0
        %v502 = vsel %vm501, %v485, 3e+38
        %v503 = vsel %vm501, %v486, 3e+38
        %v504 = vsel %vm501, %v487, 3e+38
        %v505 = vsel %vm501, %v488, 3e+38
        %v506 = vsel %vm501, %v489, 3e+38
        %v507 = vsel %vm501, %v490, 3e+38
        %v508 = vsel %vm501, %v491, 3e+38
        %v509 = vsel %vm501, %v492, 3e+38
        %v510 = vsel %vm501, %v493, 3e+38
        %v511 = vsel %vm501, %v494, 3e+38
        %v512 = vsel %vm501, %v495, 3e+38
        %v513 = vsel %vm501, %v496, 3e+38
        %v514 = vsel %vm501, %v497, 3e+38
        %v515 = vsel %vm501, %v498, 3e+38
        %v516 = vsel %vm501, %v499, 3e+38
        %v517 = vsel %vm501, %v500, 3e+38
        %vm518 = vcmp.eq.f32.partialorder %v405, %v485
        %vm519 = vcmp.eq.f32.partialorder %v406, %v486
        %vm520 = vcmp.eq.f32.partialorder %v407, %v487
        %vm521 = vcmp.eq.f32.partialorder %v408, %v488
        %vm522 = vcmp.eq.f32.partialorder %v409, %v489
        %vm523 = vcmp.eq.f32.partialorder %v410, %v490
        %vm524 = vcmp.eq.f32.partialorder %v411, %v491
        %vm525 = vcmp.eq.f32.partialorder %v412, %v492
        %vm526 = vcmp.eq.f32.partialorder %v413, %v493
        %vm527 = vcmp.eq.f32.partialorder %v414, %v494
        %vm528 = vcmp.eq.f32.partialorder %v415, %v495
        %vm529 = vcmp.eq.f32.partialorder %v416, %v496
        %vm530 = vcmp.eq.f32.partialorder %v417, %v497
        %vm531 = vcmp.eq.f32.partialorder %v418, %v498
        %vm532 = vcmp.eq.f32.partialorder %v419, %v499
        %vm533 = vcmp.eq.f32.partialorder %v420, %v500
        %v534 = vsel %vm518, 3e+38, %v405
        %v535 = vsel %vm519, 3e+38, %v406
        %v536 = vsel %vm520, 3e+38, %v407
        %v537 = vsel %vm521, 3e+38, %v408
        %v538 = vsel %vm522, 3e+38, %v409
        %v539 = vsel %vm523, 3e+38, %v410
        %v540 = vsel %vm524, 3e+38, %v411
        %v541 = vsel %vm525, 3e+38, %v412
        %v542 = vsel %vm526, 3e+38, %v413
        %v543 = vsel %vm527, 3e+38, %v414
        %v544 = vsel %vm528, 3e+38, %v415
        %v545 = vsel %vm529, 3e+38, %v416
        %v546 = vsel %vm530, 3e+38, %v417
        %v547 = vsel %vm531, 3e+38, %v418
        %v548 = vsel %vm532, 3e+38, %v419
        %v549 = vsel %vm533, 3e+38, %v420
        %vm550 = vcmp.eq.f32.partialorder %v383, %v485
        %vm551 = vcmp.eq.f32.partialorder %v384, %v486
        %vm552 = vcmp.eq.f32.partialorder %v385, %v487
        %vm553 = vcmp.eq.f32.partialorder %v386, %v488
        %vm554 = vcmp.eq.f32.partialorder %v387, %v489
        %vm555 = vcmp.eq.f32.partialorder %v388, %v490
        %vm556 = vcmp.eq.f32.partialorder %v389, %v491
        %vm557 = vcmp.eq.f32.partialorder %v390, %v492
        %vm558 = vcmp.eq.f32.partialorder %v391, %v493
        %vm559 = vcmp.eq.f32.partialorder %v392, %v494
        %vm560 = vcmp.eq.f32.partialorder %v393, %v495
        %vm561 = vcmp.eq.f32.partialorder %v394, %v496
        %vm562 = vcmp.eq.f32.partialorder %v395, %v497
        %vm563 = vcmp.eq.f32.partialorder %v396, %v498
        %vm564 = vcmp.eq.f32.partialorder %v397, %v499
        %vm565 = vcmp.eq.f32.partialorder %v398, %v500
        %v566 = vsel %vm550, 3e+38, %v383
        %v567 = vsel %vm551, 3e+38, %v384
        %v568 = vsel %vm552, 3e+38, %v385
        %v569 = vsel %vm553, 3e+38, %v386
        %v570 = vsel %vm554, 3e+38, %v387
        %v571 = vsel %vm555, 3e+38, %v388
        %v572 = vsel %vm556, 3e+38, %v389
        %v573 = vsel %vm557, 3e+38, %v390
        %v574 = vsel %vm558, 3e+38, %v391
        %v575 = vsel %vm559, 3e+38, %v392
        %v576 = vsel %vm560, 3e+38, %v393
        %v577 = vsel %vm561, 3e+38, %v394
        %v578 = vsel %vm562, 3e+38, %v395
        %v579 = vsel %vm563, 3e+38, %v396
        %v580 = vsel %vm564, 3e+38, %v397
        %v581 = vsel %vm565, 3e+38, %v398
        %582 = vmin.xlane.f32.xlu0 %v534
        %v583 = vpop.xlane.xlu0 %582
        %584 = vmin.xlane.f32.xlu0 %v535
        %v585 = vpop.xlane.xlu0 %584
        %586 = vmin.xlane.f32.xlu0 %v536
        %v587 = vpop.xlane.xlu0 %586
        %588 = vmin.xlane.f32.xlu0 %v537
        %v589 = vpop.xlane.xlu0 %588
        %590 = vmin.xlane.f32.xlu0 %v538
        %v591 = vpop.xlane.xlu0 %590
        %592 = vmin.xlane.f32.xlu0 %v539
        %v593 = vpop.xlane.xlu0 %592
        %594 = vmin.xlane.f32.xlu0 %v540
        %v595 = vpop.xlane.xlu0 %594
        %596 = vmin.xlane.f32.xlu0 %v541
        %v597 = vpop.xlane.xlu0 %596
        %598 = vmin.xlane.f32.xlu0 %v542
        %v599 = vpop.xlane.xlu0 %598
        %600 = vmin.xlane.f32.xlu0 %v543
        %v601 = vpop.xlane.xlu0 %600
        %602 = vmin.xlane.f32.xlu0 %v544
        %v603 = vpop.xlane.xlu0 %602
        %604 = vmin.xlane.f32.xlu0 %v545
        %v605 = vpop.xlane.xlu0 %604
        %606 = vmin.xlane.f32.xlu0 %v546
        %v607 = vpop.xlane.xlu0 %606
        %608 = vmin.xlane.f32.xlu0 %v547
        %v609 = vpop.xlane.xlu0 %608
        %610 = vmin.xlane.f32.xlu0 %v548
        %v611 = vpop.xlane.xlu0 %610
        %612 = vmin.xlane.f32.xlu0 %v549
        %v613 = vpop.xlane.xlu0 %612
        %614 = vmin.xlane.f32.xlu0 %v566
        %v615 = vpop.xlane.xlu0 %614
        %616 = vmin.xlane.f32.xlu0 %v567
        %v617 = vpop.xlane.xlu0 %616
        %618 = vmin.xlane.f32.xlu0 %v568
        %v619 = vpop.xlane.xlu0 %618
        %620 = vmin.xlane.f32.xlu0 %v569
        %v621 = vpop.xlane.xlu0 %620
        %622 = vmin.xlane.f32.xlu0 %v570
        %v623 = vpop.xlane.xlu0 %622
        %624 = vmin.xlane.f32.xlu0 %v571
        %v625 = vpop.xlane.xlu0 %624
        %626 = vmin.xlane.f32.xlu0 %v572
        %v627 = vpop.xlane.xlu0 %626
        %628 = vmin.xlane.f32.xlu0 %v573
        %v629 = vpop.xlane.xlu0 %628
        %630 = vmin.xlane.f32.xlu0 %v574
        %v631 = vpop.xlane.xlu0 %630
        %632 = vmin.xlane.f32.xlu0 %v575
        %v633 = vpop.xlane.xlu0 %632
        %634 = vmin.xlane.f32.xlu0 %v576
        %v635 = vpop.xlane.xlu0 %634
        %636 = vmin.xlane.f32.xlu0 %v577
        %v637 = vpop.xlane.xlu0 %636
        %638 = vmin.xlane.f32.xlu0 %v578
        %v639 = vpop.xlane.xlu0 %638
        %640 = vmin.xlane.f32.xlu0 %v579
        %v641 = vpop.xlane.xlu0 %640
        %642 = vmin.xlane.f32.xlu0 %v580
        %v643 = vpop.xlane.xlu0 %642
        %644 = vmin.xlane.f32.xlu0 %v581
        %v645 = vpop.xlane.xlu0 %644
        %v646 = vmin.f32 %v583, %v615
        %v647 = vmin.f32 %v585, %v617
        %v648 = vmin.f32 %v587, %v619
        %v649 = vmin.f32 %v589, %v621
        %v650 = vmin.f32 %v591, %v623
        %v651 = vmin.f32 %v593, %v625
        %v652 = vmin.f32 %v595, %v627
        %v653 = vmin.f32 %v597, %v629
        %v654 = vmin.f32 %v599, %v631
        %v655 = vmin.f32 %v601, %v633
        %v656 = vmin.f32 %v603, %v635
        %v657 = vmin.f32 %v605, %v637
        %v658 = vmin.f32 %v607, %v639
        %v659 = vmin.f32 %v609, %v641
        %v660 = vmin.f32 %v611, %v643
        %v661 = vmin.f32 %v613, %v645
        %vm662 = vcmp.eq.s32.totalorder %v404, 1
        %v663 = vsel %vm662, %v646, %v502
        %v664 = vsel %vm662, %v647, %v503
        %v665 = vsel %vm662, %v648, %v504
        %v666 = vsel %vm662, %v649, %v505
        %v667 = vsel %vm662, %v650, %v506
        %v668 = vsel %vm662, %v651, %v507
        %v669 = vsel %vm662, %v652, %v508
        %v670 = vsel %vm662, %v653, %v509
        %v671 = vsel %vm662, %v654, %v510
        %v672 = vsel %vm662, %v655, %v511
        %v673 = vsel %vm662, %v656, %v512
        %v674 = vsel %vm662, %v657, %v513
        %v675 = vsel %vm662, %v658, %v514
        %v676 = vsel %vm662, %v659, %v515
        %v677 = vsel %vm662, %v660, %v516
        %v678 = vsel %vm662, %v661, %v517
        %vm679 = vcmp.eq.f32.partialorder %v534, %v646
        %vm680 = vcmp.eq.f32.partialorder %v535, %v647
        %vm681 = vcmp.eq.f32.partialorder %v536, %v648
        %vm682 = vcmp.eq.f32.partialorder %v537, %v649
        %vm683 = vcmp.eq.f32.partialorder %v538, %v650
        %vm684 = vcmp.eq.f32.partialorder %v539, %v651
        %vm685 = vcmp.eq.f32.partialorder %v540, %v652
        %vm686 = vcmp.eq.f32.partialorder %v541, %v653
        %vm687 = vcmp.eq.f32.partialorder %v542, %v654
        %vm688 = vcmp.eq.f32.partialorder %v543, %v655
        %vm689 = vcmp.eq.f32.partialorder %v544, %v656
        %vm690 = vcmp.eq.f32.partialorder %v545, %v657
        %vm691 = vcmp.eq.f32.partialorder %v546, %v658
        %vm692 = vcmp.eq.f32.partialorder %v547, %v659
        %vm693 = vcmp.eq.f32.partialorder %v548, %v660
        %vm694 = vcmp.eq.f32.partialorder %v549, %v661
        %v695 = vsel %vm679, 3e+38, %v534
        %v696 = vsel %vm680, 3e+38, %v535
        %v697 = vsel %vm681, 3e+38, %v536
        %v698 = vsel %vm682, 3e+38, %v537
        %v699 = vsel %vm683, 3e+38, %v538
        %v700 = vsel %vm684, 3e+38, %v539
        %v701 = vsel %vm685, 3e+38, %v540
        %v702 = vsel %vm686, 3e+38, %v541
        %v703 = vsel %vm687, 3e+38, %v542
        %v704 = vsel %vm688, 3e+38, %v543
        %v705 = vsel %vm689, 3e+38, %v544
        %v706 = vsel %vm690, 3e+38, %v545
        %v707 = vsel %vm691, 3e+38, %v546
        %v708 = vsel %vm692, 3e+38, %v547
        %v709 = vsel %vm693, 3e+38, %v548
        %v710 = vsel %vm694, 3e+38, %v549
        %vm711 = vcmp.eq.f32.partialorder %v566, %v646
        %vm712 = vcmp.eq.f32.partialorder %v567, %v647
        %vm713 = vcmp.eq.f32.partialorder %v568, %v648
        %vm714 = vcmp.eq.f32.partialorder %v569, %v649
        %vm715 = vcmp.eq.f32.partialorder %v570, %v650
        %vm716 = vcmp.eq.f32.partialorder %v571, %v651
        %vm717 = vcmp.eq.f32.partialorder %v572, %v652
        %vm718 = vcmp.eq.f32.partialorder %v573, %v653
        %vm719 = vcmp.eq.f32.partialorder %v574, %v654
        %vm720 = vcmp.eq.f32.partialorder %v575, %v655
        %vm721 = vcmp.eq.f32.partialorder %v576, %v656
        %vm722 = vcmp.eq.f32.partialorder %v577, %v657
        %vm723 = vcmp.eq.f32.partialorder %v578, %v658
        %vm724 = vcmp.eq.f32.partialorder %v579, %v659
        %vm725 = vcmp.eq.f32.partialorder %v580, %v660
        %vm726 = vcmp.eq.f32.partialorder %v581, %v661
        %v727 = vsel %vm711, 3e+38, %v566
        %v728 = vsel %vm712, 3e+38, %v567
        %v729 = vsel %vm713, 3e+38, %v568
        %v730 = vsel %vm714, 3e+38, %v569
        %v731 = vsel %vm715, 3e+38, %v570
        %v732 = vsel %vm716, 3e+38, %v571
        %v733 = vsel %vm717, 3e+38, %v572
        %v734 = vsel %vm718, 3e+38, %v573
        %v735 = vsel %vm719, 3e+38, %v574
        %v736 = vsel %vm720, 3e+38, %v575
        %v737 = vsel %vm721, 3e+38, %v576
        %v738 = vsel %vm722, 3e+38, %v577
        %v739 = vsel %vm723, 3e+38, %v578
        %v740 = vsel %vm724, 3e+38, %v579
        %v741 = vsel %vm725, 3e+38, %v580
        %v742 = vsel %vm726, 3e+38, %v581
        %743 = vmin.xlane.f32.xlu0 %v695
        %v744 = vpop.xlane.xlu0 %743
        %745 = vmin.xlane.f32.xlu0 %v696
        %v746 = vpop.xlane.xlu0 %745
        %747 = vmin.xlane.f32.xlu0 %v697
        %v748 = vpop.xlane.xlu0 %747
        %749 = vmin.xlane.f32.xlu0 %v698
        %v750 = vpop.xlane.xlu0 %749
        %751 = vmin.xlane.f32.xlu0 %v699
        %v752 = vpop.xlane.xlu0 %751
        %753 = vmin.xlane.f32.xlu0 %v700
        %v754 = vpop.xlane.xlu0 %753
        %755 = vmin.xlane.f32.xlu0 %v701
        %v756 = vpop.xlane.xlu0 %755
        %757 = vmin.xlane.f32.xlu0 %v702
        %v758 = vpop.xlane.xlu0 %757
        %759 = vmin.xlane.f32.xlu0 %v703
        %v760 = vpop.xlane.xlu0 %759
        %761 = vmin.xlane.f32.xlu0 %v704
        %v762 = vpop.xlane.xlu0 %761
        %763 = vmin.xlane.f32.xlu0 %v705
        %v764 = vpop.xlane.xlu0 %763
        %765 = vmin.xlane.f32.xlu0 %v706
        %v766 = vpop.xlane.xlu0 %765
        %767 = vmin.xlane.f32.xlu0 %v707
        %v768 = vpop.xlane.xlu0 %767
        %769 = vmin.xlane.f32.xlu0 %v708
        %v770 = vpop.xlane.xlu0 %769
        %771 = vmin.xlane.f32.xlu0 %v709
        %v772 = vpop.xlane.xlu0 %771
        %773 = vmin.xlane.f32.xlu0 %v710
        %v774 = vpop.xlane.xlu0 %773
        %775 = vmin.xlane.f32.xlu0 %v727
        %v776 = vpop.xlane.xlu0 %775
        %777 = vmin.xlane.f32.xlu0 %v728
        %v778 = vpop.xlane.xlu0 %777
        %779 = vmin.xlane.f32.xlu0 %v729
        %v780 = vpop.xlane.xlu0 %779
        %781 = vmin.xlane.f32.xlu0 %v730
        %v782 = vpop.xlane.xlu0 %781
        %783 = vmin.xlane.f32.xlu0 %v731
        %v784 = vpop.xlane.xlu0 %783
        %785 = vmin.xlane.f32.xlu0 %v732
        %v786 = vpop.xlane.xlu0 %785
        %787 = vmin.xlane.f32.xlu0 %v733
        %v788 = vpop.xlane.xlu0 %787
        %789 = vmin.xlane.f32.xlu0 %v734
        %v790 = vpop.xlane.xlu0 %789
        %791 = vmin.xlane.f32.xlu0 %v735
        %v792 = vpop.xlane.xlu0 %791
        %793 = vmin.xlane.f32.xlu0 %v736
        %v794 = vpop.xlane.xlu0 %793
        %795 = vmin.xlane.f32.xlu0 %v737
        %v796 = vpop.xlane.xlu0 %795
        %797 = vmin.xlane.f32.xlu0 %v738
        %v798 = vpop.xlane.xlu0 %797
        %799 = vmin.xlane.f32.xlu0 %v739
        %v800 = vpop.xlane.xlu0 %799
        %801 = vmin.xlane.f32.xlu0 %v740
        %v802 = vpop.xlane.xlu0 %801
        %803 = vmin.xlane.f32.xlu0 %v741
        %v804 = vpop.xlane.xlu0 %803
        %805 = vmin.xlane.f32.xlu0 %v742
        %v806 = vpop.xlane.xlu0 %805
        %v807 = vmin.f32 %v744, %v776
        %v808 = vmin.f32 %v746, %v778
        %v809 = vmin.f32 %v748, %v780
        %v810 = vmin.f32 %v750, %v782
        %v811 = vmin.f32 %v752, %v784
        %v812 = vmin.f32 %v754, %v786
        %v813 = vmin.f32 %v756, %v788
        %v814 = vmin.f32 %v758, %v790
        %v815 = vmin.f32 %v760, %v792
        %v816 = vmin.f32 %v762, %v794
        %v817 = vmin.f32 %v764, %v796
        %v818 = vmin.f32 %v766, %v798
        %v819 = vmin.f32 %v768, %v800
        %v820 = vmin.f32 %v770, %v802
        %v821 = vmin.f32 %v772, %v804
        %v822 = vmin.f32 %v774, %v806
        %vm823 = vcmp.eq.s32.totalorder %v404, 2
        %v824 = vsel %vm823, %v807, %v663
        %v825 = vsel %vm823, %v808, %v664
        %v826 = vsel %vm823, %v809, %v665
        %v827 = vsel %vm823, %v810, %v666
        %v828 = vsel %vm823, %v811, %v667
        %v829 = vsel %vm823, %v812, %v668
        %v830 = vsel %vm823, %v813, %v669
        %v831 = vsel %vm823, %v814, %v670
        %v832 = vsel %vm823, %v815, %v671
        %v833 = vsel %vm823, %v816, %v672
        %v834 = vsel %vm823, %v817, %v673
        %v835 = vsel %vm823, %v818, %v674
        %v836 = vsel %vm823, %v819, %v675
        %v837 = vsel %vm823, %v820, %v676
        %v838 = vsel %vm823, %v821, %v677
        %v839 = vsel %vm823, %v822, %v678
        %vm840 = vcmp.eq.f32.partialorder %v695, %v807
        %vm841 = vcmp.eq.f32.partialorder %v696, %v808
        %vm842 = vcmp.eq.f32.partialorder %v697, %v809
        %vm843 = vcmp.eq.f32.partialorder %v698, %v810
        %vm844 = vcmp.eq.f32.partialorder %v699, %v811
        %vm845 = vcmp.eq.f32.partialorder %v700, %v812
        %vm846 = vcmp.eq.f32.partialorder %v701, %v813
        %vm847 = vcmp.eq.f32.partialorder %v702, %v814
        %vm848 = vcmp.eq.f32.partialorder %v703, %v815
        %vm849 = vcmp.eq.f32.partialorder %v704, %v816
        %vm850 = vcmp.eq.f32.partialorder %v705, %v817
        %vm851 = vcmp.eq.f32.partialorder %v706, %v818
        %vm852 = vcmp.eq.f32.partialorder %v707, %v819
        %vm853 = vcmp.eq.f32.partialorder %v708, %v820
        %vm854 = vcmp.eq.f32.partialorder %v709, %v821
        %vm855 = vcmp.eq.f32.partialorder %v710, %v822
        %v856 = vsel %vm840, 3e+38, %v695
        %v857 = vsel %vm841, 3e+38, %v696
        %v858 = vsel %vm842, 3e+38, %v697
        %v859 = vsel %vm843, 3e+38, %v698
        %v860 = vsel %vm844, 3e+38, %v699
        %v861 = vsel %vm845, 3e+38, %v700
        %v862 = vsel %vm846, 3e+38, %v701
        %v863 = vsel %vm847, 3e+38, %v702
        %v864 = vsel %vm848, 3e+38, %v703
        %v865 = vsel %vm849, 3e+38, %v704
        %v866 = vsel %vm850, 3e+38, %v705
        %v867 = vsel %vm851, 3e+38, %v706
        %v868 = vsel %vm852, 3e+38, %v707
        %v869 = vsel %vm853, 3e+38, %v708
        %v870 = vsel %vm854, 3e+38, %v709
        %v871 = vsel %vm855, 3e+38, %v710
        %vm872 = vcmp.eq.f32.partialorder %v727, %v807
        %vm873 = vcmp.eq.f32.partialorder %v728, %v808
        %vm874 = vcmp.eq.f32.partialorder %v729, %v809
        %vm875 = vcmp.eq.f32.partialorder %v730, %v810
        %vm876 = vcmp.eq.f32.partialorder %v731, %v811
        %vm877 = vcmp.eq.f32.partialorder %v732, %v812
        %vm878 = vcmp.eq.f32.partialorder %v733, %v813
        %vm879 = vcmp.eq.f32.partialorder %v734, %v814
        %vm880 = vcmp.eq.f32.partialorder %v735, %v815
        %vm881 = vcmp.eq.f32.partialorder %v736, %v816
        %vm882 = vcmp.eq.f32.partialorder %v737, %v817
        %vm883 = vcmp.eq.f32.partialorder %v738, %v818
        %vm884 = vcmp.eq.f32.partialorder %v739, %v819
        %vm885 = vcmp.eq.f32.partialorder %v740, %v820
        %vm886 = vcmp.eq.f32.partialorder %v741, %v821
        %vm887 = vcmp.eq.f32.partialorder %v742, %v822
        %v888 = vsel %vm872, 3e+38, %v727
        %v889 = vsel %vm873, 3e+38, %v728
        %v890 = vsel %vm874, 3e+38, %v729
        %v891 = vsel %vm875, 3e+38, %v730
        %v892 = vsel %vm876, 3e+38, %v731
        %v893 = vsel %vm877, 3e+38, %v732
        %v894 = vsel %vm878, 3e+38, %v733
        %v895 = vsel %vm879, 3e+38, %v734
        %v896 = vsel %vm880, 3e+38, %v735
        %v897 = vsel %vm881, 3e+38, %v736
        %v898 = vsel %vm882, 3e+38, %v737
        %v899 = vsel %vm883, 3e+38, %v738
        %v900 = vsel %vm884, 3e+38, %v739
        %v901 = vsel %vm885, 3e+38, %v740
        %v902 = vsel %vm886, 3e+38, %v741
        %v903 = vsel %vm887, 3e+38, %v742
        %904 = vmin.xlane.f32.xlu0 %v856
        %v905 = vpop.xlane.xlu0 %904
        %906 = vmin.xlane.f32.xlu0 %v857
        %v907 = vpop.xlane.xlu0 %906
        %908 = vmin.xlane.f32.xlu0 %v858
        %v909 = vpop.xlane.xlu0 %908
        %910 = vmin.xlane.f32.xlu0 %v859
        %v911 = vpop.xlane.xlu0 %910
        %912 = vmin.xlane.f32.xlu0 %v860
        %v913 = vpop.xlane.xlu0 %912
        %914 = vmin.xlane.f32.xlu0 %v861
        %v915 = vpop.xlane.xlu0 %914
        %916 = vmin.xlane.f32.xlu0 %v862
        %v917 = vpop.xlane.xlu0 %916
        %918 = vmin.xlane.f32.xlu0 %v863
        %v919 = vpop.xlane.xlu0 %918
        %920 = vmin.xlane.f32.xlu0 %v864
        %v921 = vpop.xlane.xlu0 %920
        %922 = vmin.xlane.f32.xlu0 %v865
        %v923 = vpop.xlane.xlu0 %922
        %924 = vmin.xlane.f32.xlu0 %v866
        %v925 = vpop.xlane.xlu0 %924
        %926 = vmin.xlane.f32.xlu0 %v867
        %v927 = vpop.xlane.xlu0 %926
        %928 = vmin.xlane.f32.xlu0 %v868
        %v929 = vpop.xlane.xlu0 %928
        %930 = vmin.xlane.f32.xlu0 %v869
        %v931 = vpop.xlane.xlu0 %930
        %932 = vmin.xlane.f32.xlu0 %v870
        %v933 = vpop.xlane.xlu0 %932
        %934 = vmin.xlane.f32.xlu0 %v871
        %v935 = vpop.xlane.xlu0 %934
        %936 = vmin.xlane.f32.xlu0 %v888
        %v937 = vpop.xlane.xlu0 %936
        %938 = vmin.xlane.f32.xlu0 %v889
        %v939 = vpop.xlane.xlu0 %938
        %940 = vmin.xlane.f32.xlu0 %v890
        %v941 = vpop.xlane.xlu0 %940
        %942 = vmin.xlane.f32.xlu0 %v891
        %v943 = vpop.xlane.xlu0 %942
        %944 = vmin.xlane.f32.xlu0 %v892
        %v945 = vpop.xlane.xlu0 %944
        %946 = vmin.xlane.f32.xlu0 %v893
        %v947 = vpop.xlane.xlu0 %946
        %948 = vmin.xlane.f32.xlu0 %v894
        %v949 = vpop.xlane.xlu0 %948
        %950 = vmin.xlane.f32.xlu0 %v895
        %v951 = vpop.xlane.xlu0 %950
        %952 = vmin.xlane.f32.xlu0 %v896
        %v953 = vpop.xlane.xlu0 %952
        %954 = vmin.xlane.f32.xlu0 %v897
        %v955 = vpop.xlane.xlu0 %954
        %956 = vmin.xlane.f32.xlu0 %v898
        %v957 = vpop.xlane.xlu0 %956
        %958 = vmin.xlane.f32.xlu0 %v899
        %v959 = vpop.xlane.xlu0 %958
        %960 = vmin.xlane.f32.xlu0 %v900
        %v961 = vpop.xlane.xlu0 %960
        %962 = vmin.xlane.f32.xlu0 %v901
        %v963 = vpop.xlane.xlu0 %962
        %964 = vmin.xlane.f32.xlu0 %v902
        %v965 = vpop.xlane.xlu0 %964
        %966 = vmin.xlane.f32.xlu0 %v903
        %v967 = vpop.xlane.xlu0 %966
        %v968 = vmin.f32 %v905, %v937
        %v969 = vmin.f32 %v907, %v939
        %v970 = vmin.f32 %v909, %v941
        %v971 = vmin.f32 %v911, %v943
        %v972 = vmin.f32 %v913, %v945
        %v973 = vmin.f32 %v915, %v947
        %v974 = vmin.f32 %v917, %v949
        %v975 = vmin.f32 %v919, %v951
        %v976 = vmin.f32 %v921, %v953
        %v977 = vmin.f32 %v923, %v955
        %v978 = vmin.f32 %v925, %v957
        %v979 = vmin.f32 %v927, %v959
        %v980 = vmin.f32 %v929, %v961
        %v981 = vmin.f32 %v931, %v963
        %v982 = vmin.f32 %v933, %v965
        %v983 = vmin.f32 %v935, %v967
        %vm984 = vcmp.eq.s32.totalorder %v404, 3
        %v985 = vsel %vm984, %v968, %v824
        %v986 = vsel %vm984, %v969, %v825
        %v987 = vsel %vm984, %v970, %v826
        %v988 = vsel %vm984, %v971, %v827
        %v989 = vsel %vm984, %v972, %v828
        %v990 = vsel %vm984, %v973, %v829
        %v991 = vsel %vm984, %v974, %v830
        %v992 = vsel %vm984, %v975, %v831
        %v993 = vsel %vm984, %v976, %v832
        %v994 = vsel %vm984, %v977, %v833
        %v995 = vsel %vm984, %v978, %v834
        %v996 = vsel %vm984, %v979, %v835
        %v997 = vsel %vm984, %v980, %v836
        %v998 = vsel %vm984, %v981, %v837
        %v999 = vsel %vm984, %v982, %v838
        %v1000 = vsel %vm984, %v983, %v839
        %vm1001 = vcmp.eq.f32.partialorder %v856, %v968
        %vm1002 = vcmp.eq.f32.partialorder %v857, %v969
        %vm1003 = vcmp.eq.f32.partialorder %v858, %v970
        %vm1004 = vcmp.eq.f32.partialorder %v859, %v971
        %vm1005 = vcmp.eq.f32.partialorder %v860, %v972
        %vm1006 = vcmp.eq.f32.partialorder %v861, %v973
        %vm1007 = vcmp.eq.f32.partialorder %v862, %v974
        %vm1008 = vcmp.eq.f32.partialorder %v863, %v975
        %vm1009 = vcmp.eq.f32.partialorder %v864, %v976
        %vm1010 = vcmp.eq.f32.partialorder %v865, %v977
        %vm1011 = vcmp.eq.f32.partialorder %v866, %v978
        %vm1012 = vcmp.eq.f32.partialorder %v867, %v979
        %vm1013 = vcmp.eq.f32.partialorder %v868, %v980
        %vm1014 = vcmp.eq.f32.partialorder %v869, %v981
        %vm1015 = vcmp.eq.f32.partialorder %v870, %v982
        %vm1016 = vcmp.eq.f32.partialorder %v871, %v983
        %v1017 = vsel %vm1001, 3e+38, %v856
        %v1018 = vsel %vm1002, 3e+38, %v857
        %v1019 = vsel %vm1003, 3e+38, %v858
        %v1020 = vsel %vm1004, 3e+38, %v859
        %v1021 = vsel %vm1005, 3e+38, %v860
        %v1022 = vsel %vm1006, 3e+38, %v861
        %v1023 = vsel %vm1007, 3e+38, %v862
        %v1024 = vsel %vm1008, 3e+38, %v863
        %v1025 = vsel %vm1009, 3e+38, %v864
        %v1026 = vsel %vm1010, 3e+38, %v865
        %v1027 = vsel %vm1011, 3e+38, %v866
        %v1028 = vsel %vm1012, 3e+38, %v867
        %v1029 = vsel %vm1013, 3e+38, %v868
        %v1030 = vsel %vm1014, 3e+38, %v869
        %v1031 = vsel %vm1015, 3e+38, %v870
        %v1032 = vsel %vm1016, 3e+38, %v871
        %vm1033 = vcmp.eq.f32.partialorder %v888, %v968
        %vm1034 = vcmp.eq.f32.partialorder %v889, %v969
        %vm1035 = vcmp.eq.f32.partialorder %v890, %v970
        %vm1036 = vcmp.eq.f32.partialorder %v891, %v971
        %vm1037 = vcmp.eq.f32.partialorder %v892, %v972
        %vm1038 = vcmp.eq.f32.partialorder %v893, %v973
        %vm1039 = vcmp.eq.f32.partialorder %v894, %v974
        %vm1040 = vcmp.eq.f32.partialorder %v895, %v975
        %vm1041 = vcmp.eq.f32.partialorder %v896, %v976
        %vm1042 = vcmp.eq.f32.partialorder %v897, %v977
        %vm1043 = vcmp.eq.f32.partialorder %v898, %v978
        %vm1044 = vcmp.eq.f32.partialorder %v899, %v979
        %vm1045 = vcmp.eq.f32.partialorder %v900, %v980
        %vm1046 = vcmp.eq.f32.partialorder %v901, %v981
        %vm1047 = vcmp.eq.f32.partialorder %v902, %v982
        %vm1048 = vcmp.eq.f32.partialorder %v903, %v983
        %v1049 = vsel %vm1033, 3e+38, %v888
        %v1050 = vsel %vm1034, 3e+38, %v889
        %v1051 = vsel %vm1035, 3e+38, %v890
        %v1052 = vsel %vm1036, 3e+38, %v891
        %v1053 = vsel %vm1037, 3e+38, %v892
        %v1054 = vsel %vm1038, 3e+38, %v893
        %v1055 = vsel %vm1039, 3e+38, %v894
        %v1056 = vsel %vm1040, 3e+38, %v895
        %v1057 = vsel %vm1041, 3e+38, %v896
        %v1058 = vsel %vm1042, 3e+38, %v897
        %v1059 = vsel %vm1043, 3e+38, %v898
        %v1060 = vsel %vm1044, 3e+38, %v899
        %v1061 = vsel %vm1045, 3e+38, %v900
        %v1062 = vsel %vm1046, 3e+38, %v901
        %v1063 = vsel %vm1047, 3e+38, %v902
        %v1064 = vsel %vm1048, 3e+38, %v903
        %1065 = vmin.xlane.f32.xlu0 %v1017
        %v1066 = vpop.xlane.xlu0 %1065
        %1067 = vmin.xlane.f32.xlu0 %v1018
        %v1068 = vpop.xlane.xlu0 %1067
        %1069 = vmin.xlane.f32.xlu0 %v1019
        %v1070 = vpop.xlane.xlu0 %1069
        %1071 = vmin.xlane.f32.xlu0 %v1020
        %v1072 = vpop.xlane.xlu0 %1071
        %1073 = vmin.xlane.f32.xlu0 %v1021
        %v1074 = vpop.xlane.xlu0 %1073
        %1075 = vmin.xlane.f32.xlu0 %v1022
        %v1076 = vpop.xlane.xlu0 %1075
        %1077 = vmin.xlane.f32.xlu0 %v1023
        %v1078 = vpop.xlane.xlu0 %1077
        %1079 = vmin.xlane.f32.xlu0 %v1024
        %v1080 = vpop.xlane.xlu0 %1079
        %1081 = vmin.xlane.f32.xlu0 %v1025
        %v1082 = vpop.xlane.xlu0 %1081
        %1083 = vmin.xlane.f32.xlu0 %v1026
        %v1084 = vpop.xlane.xlu0 %1083
        %1085 = vmin.xlane.f32.xlu0 %v1027
        %v1086 = vpop.xlane.xlu0 %1085
        %1087 = vmin.xlane.f32.xlu0 %v1028
        %v1088 = vpop.xlane.xlu0 %1087
        %1089 = vmin.xlane.f32.xlu0 %v1029
        %v1090 = vpop.xlane.xlu0 %1089
        %1091 = vmin.xlane.f32.xlu0 %v1030
        %v1092 = vpop.xlane.xlu0 %1091
        %1093 = vmin.xlane.f32.xlu0 %v1031
        %v1094 = vpop.xlane.xlu0 %1093
        %1095 = vmin.xlane.f32.xlu0 %v1032
        %v1096 = vpop.xlane.xlu0 %1095
        %1097 = vmin.xlane.f32.xlu0 %v1049
        %v1098 = vpop.xlane.xlu0 %1097
        %1099 = vmin.xlane.f32.xlu0 %v1050
        %v1100 = vpop.xlane.xlu0 %1099
        %1101 = vmin.xlane.f32.xlu0 %v1051
        %v1102 = vpop.xlane.xlu0 %1101
        %1103 = vmin.xlane.f32.xlu0 %v1052
        %v1104 = vpop.xlane.xlu0 %1103
        %1105 = vmin.xlane.f32.xlu0 %v1053
        %v1106 = vpop.xlane.xlu0 %1105
        %1107 = vmin.xlane.f32.xlu0 %v1054
        %v1108 = vpop.xlane.xlu0 %1107
        %1109 = vmin.xlane.f32.xlu0 %v1055
        %v1110 = vpop.xlane.xlu0 %1109
        %1111 = vmin.xlane.f32.xlu0 %v1056
        %v1112 = vpop.xlane.xlu0 %1111
        %1113 = vmin.xlane.f32.xlu0 %v1057
        %v1114 = vpop.xlane.xlu0 %1113
        %1115 = vmin.xlane.f32.xlu0 %v1058
        %v1116 = vpop.xlane.xlu0 %1115
        %1117 = vmin.xlane.f32.xlu0 %v1059
        %v1118 = vpop.xlane.xlu0 %1117
        %1119 = vmin.xlane.f32.xlu0 %v1060
        %v1120 = vpop.xlane.xlu0 %1119
        %1121 = vmin.xlane.f32.xlu0 %v1061
        %v1122 = vpop.xlane.xlu0 %1121
        %1123 = vmin.xlane.f32.xlu0 %v1062
        %v1124 = vpop.xlane.xlu0 %1123
        %1125 = vmin.xlane.f32.xlu0 %v1063
        %v1126 = vpop.xlane.xlu0 %1125
        %1127 = vmin.xlane.f32.xlu0 %v1064
        %v1128 = vpop.xlane.xlu0 %1127
        %v1129 = vmin.f32 %v1066, %v1098
        %v1130 = vmin.f32 %v1068, %v1100
        %v1131 = vmin.f32 %v1070, %v1102
        %v1132 = vmin.f32 %v1072, %v1104
        %v1133 = vmin.f32 %v1074, %v1106
        %v1134 = vmin.f32 %v1076, %v1108
        %v1135 = vmin.f32 %v1078, %v1110
        %v1136 = vmin.f32 %v1080, %v1112
        %v1137 = vmin.f32 %v1082, %v1114
        %v1138 = vmin.f32 %v1084, %v1116
        %v1139 = vmin.f32 %v1086, %v1118
        %v1140 = vmin.f32 %v1088, %v1120
        %v1141 = vmin.f32 %v1090, %v1122
        %v1142 = vmin.f32 %v1092, %v1124
        %v1143 = vmin.f32 %v1094, %v1126
        %v1144 = vmin.f32 %v1096, %v1128
        %vm1145 = vcmp.eq.s32.totalorder %v404, 4
        %v1146 = vsel %vm1145, %v1129, %v985
        %v1147 = vsel %vm1145, %v1130, %v986
        %v1148 = vsel %vm1145, %v1131, %v987
        %v1149 = vsel %vm1145, %v1132, %v988
        %v1150 = vsel %vm1145, %v1133, %v989
        %v1151 = vsel %vm1145, %v1134, %v990
        %v1152 = vsel %vm1145, %v1135, %v991
        %v1153 = vsel %vm1145, %v1136, %v992
        %v1154 = vsel %vm1145, %v1137, %v993
        %v1155 = vsel %vm1145, %v1138, %v994
        %v1156 = vsel %vm1145, %v1139, %v995
        %v1157 = vsel %vm1145, %v1140, %v996
        %v1158 = vsel %vm1145, %v1141, %v997
        %v1159 = vsel %vm1145, %v1142, %v998
        %v1160 = vsel %vm1145, %v1143, %v999
        %v1161 = vsel %vm1145, %v1144, %v1000
        %vm1162 = vcmp.eq.f32.partialorder %v1017, %v1129
        %vm1163 = vcmp.eq.f32.partialorder %v1018, %v1130
        %vm1164 = vcmp.eq.f32.partialorder %v1019, %v1131
        %vm1165 = vcmp.eq.f32.partialorder %v1020, %v1132
        %vm1166 = vcmp.eq.f32.partialorder %v1021, %v1133
        %vm1167 = vcmp.eq.f32.partialorder %v1022, %v1134
        %vm1168 = vcmp.eq.f32.partialorder %v1023, %v1135
        %vm1169 = vcmp.eq.f32.partialorder %v1024, %v1136
        %vm1170 = vcmp.eq.f32.partialorder %v1025, %v1137
        %vm1171 = vcmp.eq.f32.partialorder %v1026, %v1138
        %vm1172 = vcmp.eq.f32.partialorder %v1027, %v1139
        %vm1173 = vcmp.eq.f32.partialorder %v1028, %v1140
        %vm1174 = vcmp.eq.f32.partialorder %v1029, %v1141
        %vm1175 = vcmp.eq.f32.partialorder %v1030, %v1142
        %vm1176 = vcmp.eq.f32.partialorder %v1031, %v1143
        %vm1177 = vcmp.eq.f32.partialorder %v1032, %v1144
        %v1178 = vsel %vm1162, 3e+38, %v1017
        %v1179 = vsel %vm1163, 3e+38, %v1018
        %v1180 = vsel %vm1164, 3e+38, %v1019
        %v1181 = vsel %vm1165, 3e+38, %v1020
        %v1182 = vsel %vm1166, 3e+38, %v1021
        %v1183 = vsel %vm1167, 3e+38, %v1022
        %v1184 = vsel %vm1168, 3e+38, %v1023
        %v1185 = vsel %vm1169, 3e+38, %v1024
        %v1186 = vsel %vm1170, 3e+38, %v1025
        %v1187 = vsel %vm1171, 3e+38, %v1026
        %v1188 = vsel %vm1172, 3e+38, %v1027
        %v1189 = vsel %vm1173, 3e+38, %v1028
        %v1190 = vsel %vm1174, 3e+38, %v1029
        %v1191 = vsel %vm1175, 3e+38, %v1030
        %v1192 = vsel %vm1176, 3e+38, %v1031
        %v1193 = vsel %vm1177, 3e+38, %v1032
        %vm1194 = vcmp.eq.f32.partialorder %v1049, %v1129
        %vm1195 = vcmp.eq.f32.partialorder %v1050, %v1130
        %vm1196 = vcmp.eq.f32.partialorder %v1051, %v1131
        %vm1197 = vcmp.eq.f32.partialorder %v1052, %v1132
        %vm1198 = vcmp.eq.f32.partialorder %v1053, %v1133
        %vm1199 = vcmp.eq.f32.partialorder %v1054, %v1134
        %vm1200 = vcmp.eq.f32.partialorder %v1055, %v1135
        %vm1201 = vcmp.eq.f32.partialorder %v1056, %v1136
        %vm1202 = vcmp.eq.f32.partialorder %v1057, %v1137
        %vm1203 = vcmp.eq.f32.partialorder %v1058, %v1138
        %vm1204 = vcmp.eq.f32.partialorder %v1059, %v1139
        %vm1205 = vcmp.eq.f32.partialorder %v1060, %v1140
        %vm1206 = vcmp.eq.f32.partialorder %v1061, %v1141
        %vm1207 = vcmp.eq.f32.partialorder %v1062, %v1142
        %vm1208 = vcmp.eq.f32.partialorder %v1063, %v1143
        %vm1209 = vcmp.eq.f32.partialorder %v1064, %v1144
        %v1210 = vsel %vm1194, 3e+38, %v1049
        %v1211 = vsel %vm1195, 3e+38, %v1050
        %v1212 = vsel %vm1196, 3e+38, %v1051
        %v1213 = vsel %vm1197, 3e+38, %v1052
        %v1214 = vsel %vm1198, 3e+38, %v1053
        %v1215 = vsel %vm1199, 3e+38, %v1054
        %v1216 = vsel %vm1200, 3e+38, %v1055
        %v1217 = vsel %vm1201, 3e+38, %v1056
        %v1218 = vsel %vm1202, 3e+38, %v1057
        %v1219 = vsel %vm1203, 3e+38, %v1058
        %v1220 = vsel %vm1204, 3e+38, %v1059
        %v1221 = vsel %vm1205, 3e+38, %v1060
        %v1222 = vsel %vm1206, 3e+38, %v1061
        %v1223 = vsel %vm1207, 3e+38, %v1062
        %v1224 = vsel %vm1208, 3e+38, %v1063
        %v1225 = vsel %vm1209, 3e+38, %v1064
        %1226 = vmin.xlane.f32.xlu0 %v1178
        %v1227 = vpop.xlane.xlu0 %1226
        %1228 = vmin.xlane.f32.xlu0 %v1179
        %v1229 = vpop.xlane.xlu0 %1228
        %1230 = vmin.xlane.f32.xlu0 %v1180
        %v1231 = vpop.xlane.xlu0 %1230
        %1232 = vmin.xlane.f32.xlu0 %v1181
        %v1233 = vpop.xlane.xlu0 %1232
        %1234 = vmin.xlane.f32.xlu0 %v1182
        %v1235 = vpop.xlane.xlu0 %1234
        %1236 = vmin.xlane.f32.xlu0 %v1183
        %v1237 = vpop.xlane.xlu0 %1236
        %1238 = vmin.xlane.f32.xlu0 %v1184
        %v1239 = vpop.xlane.xlu0 %1238
        %1240 = vmin.xlane.f32.xlu0 %v1185
        %v1241 = vpop.xlane.xlu0 %1240
        %1242 = vmin.xlane.f32.xlu0 %v1186
        %v1243 = vpop.xlane.xlu0 %1242
        %1244 = vmin.xlane.f32.xlu0 %v1187
        %v1245 = vpop.xlane.xlu0 %1244
        %1246 = vmin.xlane.f32.xlu0 %v1188
        %v1247 = vpop.xlane.xlu0 %1246
        %1248 = vmin.xlane.f32.xlu0 %v1189
        %v1249 = vpop.xlane.xlu0 %1248
        %1250 = vmin.xlane.f32.xlu0 %v1190
        %v1251 = vpop.xlane.xlu0 %1250
        %1252 = vmin.xlane.f32.xlu0 %v1191
        %v1253 = vpop.xlane.xlu0 %1252
        %1254 = vmin.xlane.f32.xlu0 %v1192
        %v1255 = vpop.xlane.xlu0 %1254
        %1256 = vmin.xlane.f32.xlu0 %v1193
        %v1257 = vpop.xlane.xlu0 %1256
        %1258 = vmin.xlane.f32.xlu0 %v1210
        %v1259 = vpop.xlane.xlu0 %1258
        %1260 = vmin.xlane.f32.xlu0 %v1211
        %v1261 = vpop.xlane.xlu0 %1260
        %1262 = vmin.xlane.f32.xlu0 %v1212
        %v1263 = vpop.xlane.xlu0 %1262
        %1264 = vmin.xlane.f32.xlu0 %v1213
        %v1265 = vpop.xlane.xlu0 %1264
        %1266 = vmin.xlane.f32.xlu0 %v1214
        %v1267 = vpop.xlane.xlu0 %1266
        %1268 = vmin.xlane.f32.xlu0 %v1215
        %v1269 = vpop.xlane.xlu0 %1268
        %1270 = vmin.xlane.f32.xlu0 %v1216
        %v1271 = vpop.xlane.xlu0 %1270
        %1272 = vmin.xlane.f32.xlu0 %v1217
        %v1273 = vpop.xlane.xlu0 %1272
        %1274 = vmin.xlane.f32.xlu0 %v1218
        %v1275 = vpop.xlane.xlu0 %1274
        %1276 = vmin.xlane.f32.xlu0 %v1219
        %v1277 = vpop.xlane.xlu0 %1276
        %1278 = vmin.xlane.f32.xlu0 %v1220
        %v1279 = vpop.xlane.xlu0 %1278
        %1280 = vmin.xlane.f32.xlu0 %v1221
        %v1281 = vpop.xlane.xlu0 %1280
        %1282 = vmin.xlane.f32.xlu0 %v1222
        %v1283 = vpop.xlane.xlu0 %1282
        %1284 = vmin.xlane.f32.xlu0 %v1223
        %v1285 = vpop.xlane.xlu0 %1284
        %1286 = vmin.xlane.f32.xlu0 %v1224
        %v1287 = vpop.xlane.xlu0 %1286
        %1288 = vmin.xlane.f32.xlu0 %v1225
        %v1289 = vpop.xlane.xlu0 %1288
        %v1290 = vmin.f32 %v1227, %v1259
        %v1291 = vmin.f32 %v1229, %v1261
        %v1292 = vmin.f32 %v1231, %v1263
        %v1293 = vmin.f32 %v1233, %v1265
        %v1294 = vmin.f32 %v1235, %v1267
        %v1295 = vmin.f32 %v1237, %v1269
        %v1296 = vmin.f32 %v1239, %v1271
        %v1297 = vmin.f32 %v1241, %v1273
        %v1298 = vmin.f32 %v1243, %v1275
        %v1299 = vmin.f32 %v1245, %v1277
        %v1300 = vmin.f32 %v1247, %v1279
        %v1301 = vmin.f32 %v1249, %v1281
        %v1302 = vmin.f32 %v1251, %v1283
        %v1303 = vmin.f32 %v1253, %v1285
        %v1304 = vmin.f32 %v1255, %v1287
        %v1305 = vmin.f32 %v1257, %v1289
        %vm1306 = vcmp.eq.s32.totalorder %v404, 5
        %v1307 = vsel %vm1306, %v1290, %v1146
        %v1308 = vsel %vm1306, %v1291, %v1147
        %v1309 = vsel %vm1306, %v1292, %v1148
        %v1310 = vsel %vm1306, %v1293, %v1149
        %v1311 = vsel %vm1306, %v1294, %v1150
        %v1312 = vsel %vm1306, %v1295, %v1151
        %v1313 = vsel %vm1306, %v1296, %v1152
        %v1314 = vsel %vm1306, %v1297, %v1153
        %v1315 = vsel %vm1306, %v1298, %v1154
        %v1316 = vsel %vm1306, %v1299, %v1155
        %v1317 = vsel %vm1306, %v1300, %v1156
        %v1318 = vsel %vm1306, %v1301, %v1157
        %v1319 = vsel %vm1306, %v1302, %v1158
        %v1320 = vsel %vm1306, %v1303, %v1159
        %v1321 = vsel %vm1306, %v1304, %v1160
        %v1322 = vsel %vm1306, %v1305, %v1161
        %vm1323 = vcmp.eq.f32.partialorder %v1178, %v1290
        %vm1324 = vcmp.eq.f32.partialorder %v1179, %v1291
        %vm1325 = vcmp.eq.f32.partialorder %v1180, %v1292
        %vm1326 = vcmp.eq.f32.partialorder %v1181, %v1293
        %vm1327 = vcmp.eq.f32.partialorder %v1182, %v1294
        %vm1328 = vcmp.eq.f32.partialorder %v1183, %v1295
        %vm1329 = vcmp.eq.f32.partialorder %v1184, %v1296
        %vm1330 = vcmp.eq.f32.partialorder %v1185, %v1297
        %vm1331 = vcmp.eq.f32.partialorder %v1186, %v1298
        %vm1332 = vcmp.eq.f32.partialorder %v1187, %v1299
        %vm1333 = vcmp.eq.f32.partialorder %v1188, %v1300
        %vm1334 = vcmp.eq.f32.partialorder %v1189, %v1301
        %vm1335 = vcmp.eq.f32.partialorder %v1190, %v1302
        %vm1336 = vcmp.eq.f32.partialorder %v1191, %v1303
        %vm1337 = vcmp.eq.f32.partialorder %v1192, %v1304
        %vm1338 = vcmp.eq.f32.partialorder %v1193, %v1305
        %v1339 = vsel %vm1323, 3e+38, %v1178
        %v1340 = vsel %vm1324, 3e+38, %v1179
        %v1341 = vsel %vm1325, 3e+38, %v1180
        %v1342 = vsel %vm1326, 3e+38, %v1181
        %v1343 = vsel %vm1327, 3e+38, %v1182
        %v1344 = vsel %vm1328, 3e+38, %v1183
        %v1345 = vsel %vm1329, 3e+38, %v1184
        %v1346 = vsel %vm1330, 3e+38, %v1185
        %v1347 = vsel %vm1331, 3e+38, %v1186
        %v1348 = vsel %vm1332, 3e+38, %v1187
        %v1349 = vsel %vm1333, 3e+38, %v1188
        %v1350 = vsel %vm1334, 3e+38, %v1189
        %v1351 = vsel %vm1335, 3e+38, %v1190
        %v1352 = vsel %vm1336, 3e+38, %v1191
        %v1353 = vsel %vm1337, 3e+38, %v1192
        %v1354 = vsel %vm1338, 3e+38, %v1193
        %vm1355 = vcmp.eq.f32.partialorder %v1210, %v1290
        %vm1356 = vcmp.eq.f32.partialorder %v1211, %v1291
        %vm1357 = vcmp.eq.f32.partialorder %v1212, %v1292
        %vm1358 = vcmp.eq.f32.partialorder %v1213, %v1293
        %vm1359 = vcmp.eq.f32.partialorder %v1214, %v1294
        %vm1360 = vcmp.eq.f32.partialorder %v1215, %v1295
        %vm1361 = vcmp.eq.f32.partialorder %v1216, %v1296
        %vm1362 = vcmp.eq.f32.partialorder %v1217, %v1297
        %vm1363 = vcmp.eq.f32.partialorder %v1218, %v1298
        %vm1364 = vcmp.eq.f32.partialorder %v1219, %v1299
        %vm1365 = vcmp.eq.f32.partialorder %v1220, %v1300
        %vm1366 = vcmp.eq.f32.partialorder %v1221, %v1301
        %vm1367 = vcmp.eq.f32.partialorder %v1222, %v1302
        %vm1368 = vcmp.eq.f32.partialorder %v1223, %v1303
        %vm1369 = vcmp.eq.f32.partialorder %v1224, %v1304
        %vm1370 = vcmp.eq.f32.partialorder %v1225, %v1305
        %v1371 = vsel %vm1355, 3e+38, %v1210
        %v1372 = vsel %vm1356, 3e+38, %v1211
        %v1373 = vsel %vm1357, 3e+38, %v1212
        %v1374 = vsel %vm1358, 3e+38, %v1213
        %v1375 = vsel %vm1359, 3e+38, %v1214
        %v1376 = vsel %vm1360, 3e+38, %v1215
        %v1377 = vsel %vm1361, 3e+38, %v1216
        %v1378 = vsel %vm1362, 3e+38, %v1217
        %v1379 = vsel %vm1363, 3e+38, %v1218
        %v1380 = vsel %vm1364, 3e+38, %v1219
        %v1381 = vsel %vm1365, 3e+38, %v1220
        %v1382 = vsel %vm1366, 3e+38, %v1221
        %v1383 = vsel %vm1367, 3e+38, %v1222
        %v1384 = vsel %vm1368, 3e+38, %v1223
        %v1385 = vsel %vm1369, 3e+38, %v1224
        %v1386 = vsel %vm1370, 3e+38, %v1225
        %1387 = vmin.xlane.f32.xlu0 %v1339
        %v1388 = vpop.xlane.xlu0 %1387
        %1389 = vmin.xlane.f32.xlu0 %v1340
        %v1390 = vpop.xlane.xlu0 %1389
        %1391 = vmin.xlane.f32.xlu0 %v1341
        %v1392 = vpop.xlane.xlu0 %1391
        %1393 = vmin.xlane.f32.xlu0 %v1342
        %v1394 = vpop.xlane.xlu0 %1393
        %1395 = vmin.xlane.f32.xlu0 %v1343
        %v1396 = vpop.xlane.xlu0 %1395
        %1397 = vmin.xlane.f32.xlu0 %v1344
        %v1398 = vpop.xlane.xlu0 %1397
        %1399 = vmin.xlane.f32.xlu0 %v1345
        %v1400 = vpop.xlane.xlu0 %1399
        %1401 = vmin.xlane.f32.xlu0 %v1346
        %v1402 = vpop.xlane.xlu0 %1401
        %1403 = vmin.xlane.f32.xlu0 %v1347
        %v1404 = vpop.xlane.xlu0 %1403
        %1405 = vmin.xlane.f32.xlu0 %v1348
        %v1406 = vpop.xlane.xlu0 %1405
        %1407 = vmin.xlane.f32.xlu0 %v1349
        %v1408 = vpop.xlane.xlu0 %1407
        %1409 = vmin.xlane.f32.xlu0 %v1350
        %v1410 = vpop.xlane.xlu0 %1409
        %1411 = vmin.xlane.f32.xlu0 %v1351
        %v1412 = vpop.xlane.xlu0 %1411
        %1413 = vmin.xlane.f32.xlu0 %v1352
        %v1414 = vpop.xlane.xlu0 %1413
        %1415 = vmin.xlane.f32.xlu0 %v1353
        %v1416 = vpop.xlane.xlu0 %1415
        %1417 = vmin.xlane.f32.xlu0 %v1354
        %v1418 = vpop.xlane.xlu0 %1417
        %1419 = vmin.xlane.f32.xlu0 %v1371
        %v1420 = vpop.xlane.xlu0 %1419
        %1421 = vmin.xlane.f32.xlu0 %v1372
        %v1422 = vpop.xlane.xlu0 %1421
        %1423 = vmin.xlane.f32.xlu0 %v1373
        %v1424 = vpop.xlane.xlu0 %1423
        %1425 = vmin.xlane.f32.xlu0 %v1374
        %v1426 = vpop.xlane.xlu0 %1425
        %1427 = vmin.xlane.f32.xlu0 %v1375
        %v1428 = vpop.xlane.xlu0 %1427
        %1429 = vmin.xlane.f32.xlu0 %v1376
        %v1430 = vpop.xlane.xlu0 %1429
        %1431 = vmin.xlane.f32.xlu0 %v1377
        %v1432 = vpop.xlane.xlu0 %1431
        %1433 = vmin.xlane.f32.xlu0 %v1378
        %v1434 = vpop.xlane.xlu0 %1433
        %1435 = vmin.xlane.f32.xlu0 %v1379
        %v1436 = vpop.xlane.xlu0 %1435
        %1437 = vmin.xlane.f32.xlu0 %v1380
        %v1438 = vpop.xlane.xlu0 %1437
        %1439 = vmin.xlane.f32.xlu0 %v1381
        %v1440 = vpop.xlane.xlu0 %1439
        %1441 = vmin.xlane.f32.xlu0 %v1382
        %v1442 = vpop.xlane.xlu0 %1441
        %1443 = vmin.xlane.f32.xlu0 %v1383
        %v1444 = vpop.xlane.xlu0 %1443
        %1445 = vmin.xlane.f32.xlu0 %v1384
        %v1446 = vpop.xlane.xlu0 %1445
        %1447 = vmin.xlane.f32.xlu0 %v1385
        %v1448 = vpop.xlane.xlu0 %1447
        %1449 = vmin.xlane.f32.xlu0 %v1386
        %v1450 = vpop.xlane.xlu0 %1449
        %v1451 = vmin.f32 %v1388, %v1420
        %v1452 = vmin.f32 %v1390, %v1422
        %v1453 = vmin.f32 %v1392, %v1424
        %v1454 = vmin.f32 %v1394, %v1426
        %v1455 = vmin.f32 %v1396, %v1428
        %v1456 = vmin.f32 %v1398, %v1430
        %v1457 = vmin.f32 %v1400, %v1432
        %v1458 = vmin.f32 %v1402, %v1434
        %v1459 = vmin.f32 %v1404, %v1436
        %v1460 = vmin.f32 %v1406, %v1438
        %v1461 = vmin.f32 %v1408, %v1440
        %v1462 = vmin.f32 %v1410, %v1442
        %v1463 = vmin.f32 %v1412, %v1444
        %v1464 = vmin.f32 %v1414, %v1446
        %v1465 = vmin.f32 %v1416, %v1448
        %v1466 = vmin.f32 %v1418, %v1450
        %vm1467 = vcmp.eq.s32.totalorder %v404, 6
        %v1468 = vsel %vm1467, %v1451, %v1307
        %v1469 = vsel %vm1467, %v1452, %v1308
        %v1470 = vsel %vm1467, %v1453, %v1309
        %v1471 = vsel %vm1467, %v1454, %v1310
        %v1472 = vsel %vm1467, %v1455, %v1311
        %v1473 = vsel %vm1467, %v1456, %v1312
        %v1474 = vsel %vm1467, %v1457, %v1313
        %v1475 = vsel %vm1467, %v1458, %v1314
        %v1476 = vsel %vm1467, %v1459, %v1315
        %v1477 = vsel %vm1467, %v1460, %v1316
        %v1478 = vsel %vm1467, %v1461, %v1317
        %v1479 = vsel %vm1467, %v1462, %v1318
        %v1480 = vsel %vm1467, %v1463, %v1319
        %v1481 = vsel %vm1467, %v1464, %v1320
        %v1482 = vsel %vm1467, %v1465, %v1321
        %v1483 = vsel %vm1467, %v1466, %v1322
        %vm1484 = vcmp.eq.f32.partialorder %v1339, %v1451
        %vm1485 = vcmp.eq.f32.partialorder %v1340, %v1452
        %vm1486 = vcmp.eq.f32.partialorder %v1341, %v1453
        %vm1487 = vcmp.eq.f32.partialorder %v1342, %v1454
        %vm1488 = vcmp.eq.f32.partialorder %v1343, %v1455
        %vm1489 = vcmp.eq.f32.partialorder %v1344, %v1456
        %vm1490 = vcmp.eq.f32.partialorder %v1345, %v1457
        %vm1491 = vcmp.eq.f32.partialorder %v1346, %v1458
        %vm1492 = vcmp.eq.f32.partialorder %v1347, %v1459
        %vm1493 = vcmp.eq.f32.partialorder %v1348, %v1460
        %vm1494 = vcmp.eq.f32.partialorder %v1349, %v1461
        %vm1495 = vcmp.eq.f32.partialorder %v1350, %v1462
        %vm1496 = vcmp.eq.f32.partialorder %v1351, %v1463
        %vm1497 = vcmp.eq.f32.partialorder %v1352, %v1464
        %vm1498 = vcmp.eq.f32.partialorder %v1353, %v1465
        %vm1499 = vcmp.eq.f32.partialorder %v1354, %v1466
        %v1500 = vsel %vm1484, 3e+38, %v1339
        %v1501 = vsel %vm1485, 3e+38, %v1340
        %v1502 = vsel %vm1486, 3e+38, %v1341
        %v1503 = vsel %vm1487, 3e+38, %v1342
        %v1504 = vsel %vm1488, 3e+38, %v1343
        %v1505 = vsel %vm1489, 3e+38, %v1344
        %v1506 = vsel %vm1490, 3e+38, %v1345
        %v1507 = vsel %vm1491, 3e+38, %v1346
        %v1508 = vsel %vm1492, 3e+38, %v1347
        %v1509 = vsel %vm1493, 3e+38, %v1348
        %v1510 = vsel %vm1494, 3e+38, %v1349
        %v1511 = vsel %vm1495, 3e+38, %v1350
        %v1512 = vsel %vm1496, 3e+38, %v1351
        %v1513 = vsel %vm1497, 3e+38, %v1352
        %v1514 = vsel %vm1498, 3e+38, %v1353
        %v1515 = vsel %vm1499, 3e+38, %v1354
        %vm1516 = vcmp.eq.f32.partialorder %v1371, %v1451
        %vm1517 = vcmp.eq.f32.partialorder %v1372, %v1452
        %vm1518 = vcmp.eq.f32.partialorder %v1373, %v1453
        %vm1519 = vcmp.eq.f32.partialorder %v1374, %v1454
        %vm1520 = vcmp.eq.f32.partialorder %v1375, %v1455
        %vm1521 = vcmp.eq.f32.partialorder %v1376, %v1456
        %vm1522 = vcmp.eq.f32.partialorder %v1377, %v1457
        %vm1523 = vcmp.eq.f32.partialorder %v1378, %v1458
        %vm1524 = vcmp.eq.f32.partialorder %v1379, %v1459
        %vm1525 = vcmp.eq.f32.partialorder %v1380, %v1460
        %vm1526 = vcmp.eq.f32.partialorder %v1381, %v1461
        %vm1527 = vcmp.eq.f32.partialorder %v1382, %v1462
        %vm1528 = vcmp.eq.f32.partialorder %v1383, %v1463
        %vm1529 = vcmp.eq.f32.partialorder %v1384, %v1464
        %vm1530 = vcmp.eq.f32.partialorder %v1385, %v1465
        %vm1531 = vcmp.eq.f32.partialorder %v1386, %v1466
        %v1532 = vsel %vm1516, 3e+38, %v1371
        %v1533 = vsel %vm1517, 3e+38, %v1372
        %v1534 = vsel %vm1518, 3e+38, %v1373
        %v1535 = vsel %vm1519, 3e+38, %v1374
        %v1536 = vsel %vm1520, 3e+38, %v1375
        %v1537 = vsel %vm1521, 3e+38, %v1376
        %v1538 = vsel %vm1522, 3e+38, %v1377
        %v1539 = vsel %vm1523, 3e+38, %v1378
        %v1540 = vsel %vm1524, 3e+38, %v1379
        %v1541 = vsel %vm1525, 3e+38, %v1380
        %v1542 = vsel %vm1526, 3e+38, %v1381
        %v1543 = vsel %vm1527, 3e+38, %v1382
        %v1544 = vsel %vm1528, 3e+38, %v1383
        %v1545 = vsel %vm1529, 3e+38, %v1384
        %v1546 = vsel %vm1530, 3e+38, %v1385
        %v1547 = vsel %vm1531, 3e+38, %v1386
        %1548 = vmin.xlane.f32.xlu0 %v1500
        %v1549 = vpop.xlane.xlu0 %1548
        %1550 = vmin.xlane.f32.xlu0 %v1501
        %v1551 = vpop.xlane.xlu0 %1550
        %1552 = vmin.xlane.f32.xlu0 %v1502
        %v1553 = vpop.xlane.xlu0 %1552
        %1554 = vmin.xlane.f32.xlu0 %v1503
        %v1555 = vpop.xlane.xlu0 %1554
        %1556 = vmin.xlane.f32.xlu0 %v1504
        %v1557 = vpop.xlane.xlu0 %1556
        %1558 = vmin.xlane.f32.xlu0 %v1505
        %v1559 = vpop.xlane.xlu0 %1558
        %1560 = vmin.xlane.f32.xlu0 %v1506
        %v1561 = vpop.xlane.xlu0 %1560
        %1562 = vmin.xlane.f32.xlu0 %v1507
        %v1563 = vpop.xlane.xlu0 %1562
        %1564 = vmin.xlane.f32.xlu0 %v1508
        %v1565 = vpop.xlane.xlu0 %1564
        %1566 = vmin.xlane.f32.xlu0 %v1509
        %v1567 = vpop.xlane.xlu0 %1566
        %1568 = vmin.xlane.f32.xlu0 %v1510
        %v1569 = vpop.xlane.xlu0 %1568
        %1570 = vmin.xlane.f32.xlu0 %v1511
        %v1571 = vpop.xlane.xlu0 %1570
        %1572 = vmin.xlane.f32.xlu0 %v1512
        %v1573 = vpop.xlane.xlu0 %1572
        %1574 = vmin.xlane.f32.xlu0 %v1513
        %v1575 = vpop.xlane.xlu0 %1574
        %1576 = vmin.xlane.f32.xlu0 %v1514
        %v1577 = vpop.xlane.xlu0 %1576
        %1578 = vmin.xlane.f32.xlu0 %v1515
        %v1579 = vpop.xlane.xlu0 %1578
        %1580 = vmin.xlane.f32.xlu0 %v1532
        %v1581 = vpop.xlane.xlu0 %1580
        %1582 = vmin.xlane.f32.xlu0 %v1533
        %v1583 = vpop.xlane.xlu0 %1582
        %1584 = vmin.xlane.f32.xlu0 %v1534
        %v1585 = vpop.xlane.xlu0 %1584
        %1586 = vmin.xlane.f32.xlu0 %v1535
        %v1587 = vpop.xlane.xlu0 %1586
        %1588 = vmin.xlane.f32.xlu0 %v1536
        %v1589 = vpop.xlane.xlu0 %1588
        %1590 = vmin.xlane.f32.xlu0 %v1537
        %v1591 = vpop.xlane.xlu0 %1590
        %1592 = vmin.xlane.f32.xlu0 %v1538
        %v1593 = vpop.xlane.xlu0 %1592
        %1594 = vmin.xlane.f32.xlu0 %v1539
        %v1595 = vpop.xlane.xlu0 %1594
        %1596 = vmin.xlane.f32.xlu0 %v1540
        %v1597 = vpop.xlane.xlu0 %1596
        %1598 = vmin.xlane.f32.xlu0 %v1541
        %v1599 = vpop.xlane.xlu0 %1598
        %1600 = vmin.xlane.f32.xlu0 %v1542
        %v1601 = vpop.xlane.xlu0 %1600
        %1602 = vmin.xlane.f32.xlu0 %v1543
        %v1603 = vpop.xlane.xlu0 %1602
        %1604 = vmin.xlane.f32.xlu0 %v1544
        %v1605 = vpop.xlane.xlu0 %1604
        %1606 = vmin.xlane.f32.xlu0 %v1545
        %v1607 = vpop.xlane.xlu0 %1606
        %1608 = vmin.xlane.f32.xlu0 %v1546
        %v1609 = vpop.xlane.xlu0 %1608
        %1610 = vmin.xlane.f32.xlu0 %v1547
        %v1611 = vpop.xlane.xlu0 %1610
        %v1612 = vmin.f32 %v1549, %v1581
        %v1613 = vmin.f32 %v1551, %v1583
        %v1614 = vmin.f32 %v1553, %v1585
        %v1615 = vmin.f32 %v1555, %v1587
        %v1616 = vmin.f32 %v1557, %v1589
        %v1617 = vmin.f32 %v1559, %v1591
        %v1618 = vmin.f32 %v1561, %v1593
        %v1619 = vmin.f32 %v1563, %v1595
        %v1620 = vmin.f32 %v1565, %v1597
        %v1621 = vmin.f32 %v1567, %v1599
        %v1622 = vmin.f32 %v1569, %v1601
        %v1623 = vmin.f32 %v1571, %v1603
        %v1624 = vmin.f32 %v1573, %v1605
        %v1625 = vmin.f32 %v1575, %v1607
        %v1626 = vmin.f32 %v1577, %v1609
        %v1627 = vmin.f32 %v1579, %v1611
        %vm1628 = vcmp.eq.s32.totalorder %v404, 7
        %v1629 = vsel %vm1628, %v1612, %v1468
        %v1630 = vsel %vm1628, %v1613, %v1469
        %v1631 = vsel %vm1628, %v1614, %v1470
        %v1632 = vsel %vm1628, %v1615, %v1471
        %v1633 = vsel %vm1628, %v1616, %v1472
        %v1634 = vsel %vm1628, %v1617, %v1473
        %v1635 = vsel %vm1628, %v1618, %v1474
        %v1636 = vsel %vm1628, %v1619, %v1475
        %v1637 = vsel %vm1628, %v1620, %v1476
        %v1638 = vsel %vm1628, %v1621, %v1477
        %v1639 = vsel %vm1628, %v1622, %v1478
        %v1640 = vsel %vm1628, %v1623, %v1479
        %v1641 = vsel %vm1628, %v1624, %v1480
        %v1642 = vsel %vm1628, %v1625, %v1481
        %v1643 = vsel %vm1628, %v1626, %v1482
        %v1644 = vsel %vm1628, %v1627, %v1483
        %1645 = vst [vmem:[#allocation2] sm:$0xff] %v1629
        %1646 = vst [vmem:[#allocation2 + $0x8] sm:$0xff] %v1630
        %1647 = vst [vmem:[#allocation2 + $0x10] sm:$0xff] %v1631
        %1648 = vst [vmem:[#allocation2 + $0x18] sm:$0xff] %v1632
        %1649 = vst [vmem:[#allocation2 + $0x20] sm:$0xff] %v1633
        %1650 = vst [vmem:[#allocation2 + $0x28] sm:$0xff] %v1634
        %1651 = vst [vmem:[#allocation2 + $0x30] sm:$0xff] %v1635
        %1652 = vst [vmem:[#allocation2 + $0x38] sm:$0xff] %v1636
        %1653 = vst [vmem:[#allocation2 + $0x40] sm:$0xff] %v1637
        %1654 = vst [vmem:[#allocation2 + $0x48] sm:$0xff] %v1638
        %1655 = vst [vmem:[#allocation2 + $0x50] sm:$0xff] %v1639
        %1656 = vst [vmem:[#allocation2 + $0x58] sm:$0xff] %v1640
        %1657 = vst [vmem:[#allocation2 + $0x60] sm:$0xff] %v1641
        %1658 = vst [vmem:[#allocation2 + $0x68] sm:$0xff] %v1642
        %1659 = vst [vmem:[#allocation2 + $0x70] sm:$0xff] %v1643
        %1660 = vst [vmem:[#allocation2 + $0x78] sm:$0xff] %v1644
      $region36: #{tpu_custom_call.1} parent=27 // pred_fallthru
        _
      %p1661 = scmp.ge.s32.totalorder %s20, 1
      // Predicated region
      $region37: #{tpu_custom_call.1} parent=27 // pred_check
        %p1662 = pneg %p1661
      $region38: #{tpu_custom_call.1} parent=27 // pred_check_branch
        %1664 = sbr.rel (%p1662) target = $region40
      $region39: #{tpu_custom_call.1} parent=27 // pred_region
        %v1665 = vld [vmem:[#allocation2] sm:$0xff]
        %v1666 = vld [vmem:[#allocation2 + $0x8] sm:$0xff]
        %v1667 = vld [vmem:[#allocation2 + $0x10] sm:$0xff]
        %v1668 = vld [vmem:[#allocation2 + $0x18] sm:$0xff]
        %v1669 = vld [vmem:[#allocation2 + $0x20] sm:$0xff]
        %v1670 = vld [vmem:[#allocation2 + $0x28] sm:$0xff]
        %v1671 = vld [vmem:[#allocation2 + $0x30] sm:$0xff]
        %v1672 = vld [vmem:[#allocation2 + $0x38] sm:$0xff]
        %v1673 = vld [vmem:[#allocation2 + $0x40] sm:$0xff]
        %v1674 = vld [vmem:[#allocation2 + $0x48] sm:$0xff]
        %v1675 = vld [vmem:[#allocation2 + $0x50] sm:$0xff]
        %v1676 = vld [vmem:[#allocation2 + $0x58] sm:$0xff]
        %v1677 = vld [vmem:[#allocation2 + $0x60] sm:$0xff]
        %v1678 = vld [vmem:[#allocation2 + $0x68] sm:$0xff]
        %v1679 = vld [vmem:[#allocation2 + $0x70] sm:$0xff]
        %v1680 = vld [vmem:[#allocation2 + $0x78] sm:$0xff]
        %v1681 = vlaneseq
        %v1682 = vand.u32 %v1681, 127
        %vm1683 = vcmp.lt.s32.totalorder %v1682, 8
        %v1684 = vsel %vm1683, %v1665, -3e+38
        %v1685 = vsel %vm1683, %v1666, -3e+38
        %v1686 = vsel %vm1683, %v1667, -3e+38
        %v1687 = vsel %vm1683, %v1668, -3e+38
        %v1688 = vsel %vm1683, %v1669, -3e+38
        %v1689 = vsel %vm1683, %v1670, -3e+38
        %v1690 = vsel %vm1683, %v1671, -3e+38
        %v1691 = vsel %vm1683, %v1672, -3e+38
        %v1692 = vsel %vm1683, %v1673, -3e+38
        %v1693 = vsel %vm1683, %v1674, -3e+38
        %v1694 = vsel %vm1683, %v1675, -3e+38
        %v1695 = vsel %vm1683, %v1676, -3e+38
        %v1696 = vsel %vm1683, %v1677, -3e+38
        %v1697 = vsel %vm1683, %v1678, -3e+38
        %v1698 = vsel %vm1683, %v1679, -3e+38
        %v1699 = vsel %vm1683, %v1680, -3e+38
        %1700 = vmax.xlane.f32.xlu0 %v1684
        %v1701 = vpop.xlane.xlu0 %1700
        %1702 = vmax.xlane.f32.xlu0 %v1685
        %v1703 = vpop.xlane.xlu0 %1702
        %1704 = vmax.xlane.f32.xlu0 %v1686
        %v1705 = vpop.xlane.xlu0 %1704
        %1706 = vmax.xlane.f32.xlu0 %v1687
        %v1707 = vpop.xlane.xlu0 %1706
        %1708 = vmax.xlane.f32.xlu0 %v1688
        %v1709 = vpop.xlane.xlu0 %1708
        %1710 = vmax.xlane.f32.xlu0 %v1689
        %v1711 = vpop.xlane.xlu0 %1710
        %1712 = vmax.xlane.f32.xlu0 %v1690
        %v1713 = vpop.xlane.xlu0 %1712
        %1714 = vmax.xlane.f32.xlu0 %v1691
        %v1715 = vpop.xlane.xlu0 %1714
        %1716 = vmax.xlane.f32.xlu0 %v1692
        %v1717 = vpop.xlane.xlu0 %1716
        %1718 = vmax.xlane.f32.xlu0 %v1693
        %v1719 = vpop.xlane.xlu0 %1718
        %1720 = vmax.xlane.f32.xlu0 %v1694
        %v1721 = vpop.xlane.xlu0 %1720
        %1722 = vmax.xlane.f32.xlu0 %v1695
        %v1723 = vpop.xlane.xlu0 %1722
        %1724 = vmax.xlane.f32.xlu0 %v1696
        %v1725 = vpop.xlane.xlu0 %1724
        %1726 = vmax.xlane.f32.xlu0 %v1697
        %v1727 = vpop.xlane.xlu0 %1726
        %1728 = vmax.xlane.f32.xlu0 %v1698
        %v1729 = vpop.xlane.xlu0 %1728
        %1730 = vmax.xlane.f32.xlu0 %v1699
        %v1731 = vpop.xlane.xlu0 %1730
        %1732 = vmin.xlane.f32.xlu0 %v1665
        %v1733 = vpop.xlane.xlu0 %1732
        %1734 = vmin.xlane.f32.xlu0 %v1666
        %v1735 = vpop.xlane.xlu0 %1734
        %1736 = vmin.xlane.f32.xlu0 %v1667
        %v1737 = vpop.xlane.xlu0 %1736
        %1738 = vmin.xlane.f32.xlu0 %v1668
        %v1739 = vpop.xlane.xlu0 %1738
        %1740 = vmin.xlane.f32.xlu0 %v1669
        %v1741 = vpop.xlane.xlu0 %1740
        %1742 = vmin.xlane.f32.xlu0 %v1670
        %v1743 = vpop.xlane.xlu0 %1742
        %1744 = vmin.xlane.f32.xlu0 %v1671
        %v1745 = vpop.xlane.xlu0 %1744
        %1746 = vmin.xlane.f32.xlu0 %v1672
        %v1747 = vpop.xlane.xlu0 %1746
        %1748 = vmin.xlane.f32.xlu0 %v1673
        %v1749 = vpop.xlane.xlu0 %1748
        %1750 = vmin.xlane.f32.xlu0 %v1674
        %v1751 = vpop.xlane.xlu0 %1750
        %1752 = vmin.xlane.f32.xlu0 %v1675
        %v1753 = vpop.xlane.xlu0 %1752
        %1754 = vmin.xlane.f32.xlu0 %v1676
        %v1755 = vpop.xlane.xlu0 %1754
        %1756 = vmin.xlane.f32.xlu0 %v1677
        %v1757 = vpop.xlane.xlu0 %1756
        %1758 = vmin.xlane.f32.xlu0 %v1678
        %v1759 = vpop.xlane.xlu0 %1758
        %1760 = vmin.xlane.f32.xlu0 %v1679
        %v1761 = vpop.xlane.xlu0 %1760
        %1762 = vmin.xlane.f32.xlu0 %v1680
        %v1763 = vpop.xlane.xlu0 %1762
        %vm1764 = vcmp.le.f32.partialorder %v383, %v1701
        %vm1765 = vcmp.le.f32.partialorder %v384, %v1703
        %vm1766 = vcmp.le.f32.partialorder %v385, %v1705
        %vm1767 = vcmp.le.f32.partialorder %v386, %v1707
        %vm1768 = vcmp.le.f32.partialorder %v387, %v1709
        %vm1769 = vcmp.le.f32.partialorder %v388, %v1711
        %vm1770 = vcmp.le.f32.partialorder %v389, %v1713
        %vm1771 = vcmp.le.f32.partialorder %v390, %v1715
        %vm1772 = vcmp.le.f32.partialorder %v391, %v1717
        %vm1773 = vcmp.le.f32.partialorder %v392, %v1719
        %vm1774 = vcmp.le.f32.partialorder %v393, %v1721
        %vm1775 = vcmp.le.f32.partialorder %v394, %v1723
        %vm1776 = vcmp.le.f32.partialorder %v395, %v1725
        %vm1777 = vcmp.le.f32.partialorder %v396, %v1727
        %vm1778 = vcmp.le.f32.partialorder %v397, %v1729
        %vm1779 = vcmp.le.f32.partialorder %v398, %v1731
        %v1780 = vsub.f32 %v1733, %v383
        %v1781 = vsub.f32 %v1735, %v384
        %v1782 = vsub.f32 %v1737, %v385
        %v1783 = vsub.f32 %v1739, %v386
        %v1784 = vsub.f32 %v1741, %v387
        %v1785 = vsub.f32 %v1743, %v388
        %v1786 = vsub.f32 %v1745, %v389
        %v1787 = vsub.f32 %v1747, %v390
        %v1788 = vsub.f32 %v1749, %v391
        %v1789 = vsub.f32 %v1751, %v392
        %v1790 = vsub.f32 %v1753, %v393
        %v1791 = vsub.f32 %v1755, %v394
        %v1792 = vsub.f32 %v1757, %v395
        %v1793 = vsub.f32 %v1759, %v396
        %v1794 = vsub.f32 %v1761, %v397
        %v1795 = vsub.f32 %v1763, %v398
        %v1796 = vmul.f32 %v1780, 1.442695
        %v1797 = vpow.pop %v1796
        %v1798 = vmul.f32 %v1781, 1.442695
        %v1799 = vpow.pop %v1798
        %v1800 = vmul.f32 %v1782, 1.442695
        %v1801 = vpow.pop %v1800
        %v1802 = vmul.f32 %v1783, 1.442695
        %v1803 = vpow.pop %v1802
        %v1804 = vmul.f32 %v1784, 1.442695
        %v1805 = vpow.pop %v1804
        %v1806 = vmul.f32 %v1785, 1.442695
        %v1807 = vpow.pop %v1806
        %v1808 = vmul.f32 %v1786, 1.442695
        %v1809 = vpow.pop %v1808
        %v1810 = vmul.f32 %v1787, 1.442695
        %v1811 = vpow.pop %v1810
        %v1812 = vmul.f32 %v1788, 1.442695
        %v1813 = vpow.pop %v1812
        %v1814 = vmul.f32 %v1789, 1.442695
        %v1815 = vpow.pop %v1814
        %v1816 = vmul.f32 %v1790, 1.442695
        %v1817 = vpow.pop %v1816
        %v1818 = vmul.f32 %v1791, 1.442695
        %v1819 = vpow.pop %v1818
        %v1820 = vmul.f32 %v1792, 1.442695
        %v1821 = vpow.pop %v1820
        %v1822 = vmul.f32 %v1793, 1.442695
        %v1823 = vpow.pop %v1822
        %v1824 = vmul.f32 %v1794, 1.442695
        %v1825 = vpow.pop %v1824
        %v1826 = vmul.f32 %v1795, 1.442695
        %v1827 = vpow.pop %v1826
        %v1828 = vsel %vm1764, %v1797, 0.0
        %v1829 = vsel %vm1765, %v1799, 0.0
        %v1830 = vsel %vm1766, %v1801, 0.0
        %v1831 = vsel %vm1767, %v1803, 0.0
        %v1832 = vsel %vm1768, %v1805, 0.0
        %v1833 = vsel %vm1769, %v1807, 0.0
        %v1834 = vsel %vm1770, %v1809, 0.0
        %v1835 = vsel %vm1771, %v1811, 0.0
        %v1836 = vsel %vm1772, %v1813, 0.0
        %v1837 = vsel %vm1773, %v1815, 0.0
        %v1838 = vsel %vm1774, %v1817, 0.0
        %v1839 = vsel %vm1775, %v1819, 0.0
        %v1840 = vsel %vm1776, %v1821, 0.0
        %v1841 = vsel %vm1777, %v1823, 0.0
        %v1842 = vsel %vm1778, %v1825, 0.0
        %v1843 = vsel %vm1779, %v1827, 0.0
        %v1844 = vld [vmem:[#allocation3] sm:$0x7]
        %1845 = vmatpush.xpose.msra.mxu0 %v1843
        %1846 = vmatpush.xpose.msra.mxu0 %v1842
        %1847 = vmatpush.xpose.msra.mxu0 %v1841
        %1848 = vmatpush.xpose.msra.mxu0 %v1840
        %1849 = vmatpush.xpose.msra.mxu0 %v1839
        %1850 = vmatpush.xpose.msra.mxu0 %v1838
        %1851 = vmatpush.xpose.msra.mxu0 %v1837
        %1852 = vmatpush.xpose.msra.mxu0 %v1836
        %1853 = vmatpush.xpose.msra.mxu0 %v1835
        %1854 = vmatpush.xpose.msra.mxu0 %v1834
        %1855 = vmatpush.xpose.msra.mxu0 %v1833
        %1856 = vmatpush.xpose.msra.mxu0 %v1832
        %1857 = vmatpush.xpose.msra.mxu0 %v1831
        %1858 = vmatpush.xpose.msra.mxu0 %v1830
        %1859 = vmatpush.xpose.msra.mxu0 %v1829
        %1860 = vmatpush.xpose.msra.mxu0 %v1828
        %1861 = vmatmul.f32.gmra.mxu0 %v224
        %v1862 = vpop.f32.mrf.mxu0
        %v1863 = vadd.f32 0.0, %v1862
        %1864 = vdwg.mxu0
        %v1865 = vadd.f32 %v1844, %v1863
        %1866 = vst [vmem:[#allocation3] sm:$0x7] %v1865
        %v1867 = vld [vmem:[#allocation4] sm:$0x1]
        %1868 = vmatpush.xpose.msra.mxu0 %v1843
        %1869 = vmatpush.xpose.msra.mxu0 %v1842
        %1870 = vmatpush.xpose.msra.mxu0 %v1841
        %1871 = vmatpush.xpose.msra.mxu0 %v1840
        %1872 = vmatpush.xpose.msra.mxu0 %v1839
        %1873 = vmatpush.xpose.msra.mxu0 %v1838
        %1874 = vmatpush.xpose.msra.mxu0 %v1837
        %1875 = vmatpush.xpose.msra.mxu0 %v1836
        %1876 = vmatpush.xpose.msra.mxu0 %v1835
        %1877 = vmatpush.xpose.msra.mxu0 %v1834
        %1878 = vmatpush.xpose.msra.mxu0 %v1833
        %1879 = vmatpush.xpose.msra.mxu0 %v1832
        %1880 = vmatpush.xpose.msra.mxu0 %v1831
        %1881 = vmatpush.xpose.msra.mxu0 %v1830
        %1882 = vmatpush.xpose.msra.mxu0 %v1829
        %1883 = vmatpush.xpose.msra.mxu0 %v1828
        %1884 = vmatmul.f32.gmra.mxu0 1.0
        %v1885 = vpop.f32.mrf.mxu0
        %v1886 = vadd.f32 0.0, %v1885
        %1887 = vdwg.mxu0
        %v1888 = vadd.f32 %v1867, %v1886
        %1889 = vst [vmem:[#allocation4] sm:$0x1] %v1888
      $region40: #{tpu_custom_call.1} parent=27 // pred_fallthru
        _
      %p1890 = scmp.eq.s32.totalorder %s20, 1
      // Predicated region
      $region41: #{tpu_custom_call.1} parent=27 // pred_check
        %p1891 = pneg %p1890
      $region42: #{tpu_custom_call.1} parent=27 // pred_check_branch
        %1893 = sbr.rel (%p1891) target = $region44
      $region43: #{tpu_custom_call.1} parent=27 // pred_region
        %v1894 = vld [vmem:[#allocation3] sm:$0x7]
        %v1895 = vld [vmem:[#allocation4] sm:$0x1]
        %v1897 = vperm.slane %v1895, 0
        %v1899 = vrcp.pop %v1897
        %v1900 = vmul.f32 %v1897, %v1899
        %v1901 = vsub.f32 1.0, %v1900
        %v1902 = vmul.f32 %v1899, %v1901
        %v1903 = vadd.f32 %v1899, %v1902
        %vm1904 = vweird.f32 %v1897
        %vm1905 = vweird.f32 %v1899
        %vm1906 = vmor %vm1904, %vm1905
        %v1907 = vsel %vm1906, %v1899, %v1903
        %v1908 = vand.u32 2147483647, %v1897
        %vm1909 = vcmp.eq.f32.partialorder %v1908, 8.507059e+37
        %v1910 = vand.u32 %v1897, 2147483648
        %v1911 = vor.u32 1.1754944e-38, %v1910
        %v1912 = vsel %vm1909, %v1911, %v1907
        %v1913 = vmul.f32 %v1894, %v1912
        %1914 = vst [vmem:[%s201] sm:$0x7] %v1913
      $region44: #{tpu_custom_call.1} parent=27 // pred_fallthru
        _
      %p1915 = scmp.lt.s32.totalorder %s18, 1
      %s1916 = scalar_select %p1915, %s18, 1
      %p1917 = scmp.lt.s32.totalorder %s19, 0
      %s1918 = scalar_select %p1917, %s19, 0
      %s1919 = sadd.s32 %s1918, %s1916
      %s1920 = smul.addr %s1919, 4
      %s1921 = scalar_lea.vmem %s2, %s1920
      // Predicated region
      $region45: #{tpu_custom_call.1} parent=27 // pred_check
        %p1922 = pneg %p106
      $region46: #{tpu_custom_call.1} parent=27 // pred_check_branch
        %1924 = sbr.rel (%p1922) target = $region48
      $region47: #{tpu_custom_call.1} parent=27 // pred_region
        _
      $region48: #{tpu_custom_call.1} parent=27 // pred_fallthru
        _
    $region28: #{tpu_custom_call.1} parent=5 // pred_fallthru
      _
    %p1925 = scmp.le.s32.totalorder 2, %s8
    // Predicated region
    $region49: #{tpu_custom_call.1} parent=5 // pred_check
      %p1926 = pneg %p1925
    $region50: #{tpu_custom_call.1} parent=5 // pred_check_branch
      %1928 = sbr.rel (%p1926) target = $region52
    $region51: #{tpu_custom_call.1} parent=5 // pred_region
      %s1929 = ssub.s32 %s8, 2
      // Predicated region
      $region53: #{tpu_custom_call.1} parent=51 // pred_check
        %p1930 = pneg %p112
      $region54: #{tpu_custom_call.1} parent=51 // pred_check_branch
        %1932 = sbr.rel (%p1930) target = $region56
      $region55: #{tpu_custom_call.1} parent=51 // pred_region
        %p1933 = scmp.lt.s32.totalorder %s21, 1
        %s1934 = scalar_select %p1933, %s21, 1
        %p1935 = scmp.lt.s32.totalorder %s22, 0
        %s1936 = scalar_select %p1935, %s22, 0
        %s1937 = sadd.s32 %s1936, %s1934
        %s1938 = smul.addr %s1937, 4
        %s1939 = scalar_lea.vmem %s2, %s1938
      $region56: #{tpu_custom_call.1} parent=51 // pred_fallthru
        _
    $region52: #{tpu_custom_call.1} parent=5 // pred_fallthru
      _
  $region6: #{tpu_custom_call.1} parent=0 // loop_footer
    %s12 = sadd.s32 1, %s8
  $region7: #{tpu_custom_call.1} parent=0 // loop_footer_branch
    %7 = sbr.rel target = $region3
  $region8: #{tpu_custom_call.1} parent=0 // loop_exit
    _

</llo_original>
